<compile_context>
chip_gen: v5e
topology: v5e:2x2
jax: 0.10.0
libtpu: 0.0.40
codegen_flags: <defaults>
</compile_context>

<pallas_src>
import jax
import jax.numpy as jnp
import numpy as np
from jax import lax
from jax.experimental import pallas as pl
from jax.experimental.pallas import tpu as pltpu

EXPANSION = 4
EPS = 1e-5
_MIB = 1024 * 1024

_VMEM_CAP_CACHE = [None]


def _vmem_capacity_bytes():
    """Per-TensorCore VMEM capacity (conservative 64 MiB fallback)."""
    if _VMEM_CAP_CACHE[0] is None:
        cap = None
        try:
            info = pltpu.get_tpu_info()
            cap = getattr(info, "vmem_capacity_bytes", None)
        except Exception:
            cap = None
        _VMEM_CAP_CACHE[0] = int(cap) if cap else 64 * _MIB
    return _VMEM_CAP_CACHE[0]


def _vmem_limit_bytes():
    # v5e / v6e: 128 MiB per TC -> allow 96 MiB; v7x: 64 MiB -> cap at 44 MiB.
    return 96 * _MIB if _vmem_capacity_bytes() >= 128 * _MIB else 44 * _MIB


def _default_row_block():
    # Larger row tiles where VMEM allows; with bf16 intermediates even the
    # widest ResNet stage double-buffers comfortably at these sizes.
    return 1024 if _vmem_capacity_bytes() >= 128 * _MIB else 512


def _compiler_params():
    return pltpu.CompilerParams(
        dimension_semantics=("parallel",),
        vmem_limit_bytes=_vmem_limit_bytes(),
    )


def _row_tile(m, target):
    """Largest multiple of 8 that divides m and is <= target (fallback: m)."""
    # TODO(synk): replace the whole-array fallback with a pl.cdiv grid plus a
    # masked last tile for production row counts that are not multiples of 8.
    if m <= target or m % 8:
        return m
    t = target - target % 8
    while t >= 8 and m % t:
        t -= 8
    return t if t >= 8 else m


def _partial_stats(y_f32):
    """(rows, C) f32 -> (1, 2, C) per-tile [sum; sum-of-squares]."""
    ssum = jnp.sum(y_f32, axis=0, keepdims=True)
    ssq = jnp.sum(y_f32 * y_f32, axis=0, keepdims=True)
    return jnp.concatenate([ssum, ssq], axis=0)[None]


# ---------------------------------------------------------------------------
# Kernels 1/3/4: (rows, Cin) @ (Cin, Cout) channel matmul with optional fused
# BN-affine + ReLU on the input, plus per-tile per-channel (sum, sum-of-sq).
# Activations are stored in the (bf16) intermediate dtype; stats stay f32.
# ---------------------------------------------------------------------------
def _mm_stats_body(a, w_ref, y_ref, st_ref):
    y = jnp.dot(a.astype(w_ref.dtype), w_ref[...],
                preferred_element_type=jnp.float32)
    y_ref[...] = y.astype(y_ref.dtype)
    st_ref[...] = _partial_stats(y)


def _make_mm_kernel(fuse_pre_affine):
    if fuse_pre_affine:
        def kernel(x_ref, w_ref, s_ref, b_ref, y_ref, st_ref):
            # BN affine + ReLU in f32 on the raw previous-conv output.
            a = jnp.maximum(x_ref[...] * s_ref[...] + b_ref[...], 0.0)
            _mm_stats_body(a, w_ref, y_ref, st_ref)
        return kernel

    def kernel(x_ref, w_ref, y_ref, st_ref):
        _mm_stats_body(x_ref[...], w_ref, y_ref, st_ref)
    return kernel


def _matmul_stats(x_rows, w, pre_scale=None, pre_bias=None, *, row_block):
    m, k = x_rows.shape
    cout = w.shape[1]
    tm = _row_tile(m, row_block)
    grid = (m // tm,)
    fuse = pre_scale is not None
    out_dt = x_rows.dtype

    in_specs = [pl.BlockSpec((tm, k), lambda i: (i, 0)),
                pl.BlockSpec((k, cout), lambda i: (0, 0))]
    args = [x_rows, w]
    if fuse:
        in_specs += [pl.BlockSpec((1, k), lambda i: (0, 0)),
                     pl.BlockSpec((1, k), lambda i: (0, 0))]
        args += [pre_scale, pre_bias]

    y, st = pl.pallas_call(
        _make_mm_kernel(fuse),
        grid=grid,
        in_specs=in_specs,
        out_specs=(pl.BlockSpec((tm, cout), lambda i: (i, 0)),
                   pl.BlockSpec((1, 2, cout), lambda i: (i, 0, 0))),
        out_shape=(jax.ShapeDtypeStruct((m, cout), out_dt),
                   jax.ShapeDtypeStruct((grid[0], 2, cout), jnp.float32)),
        compiler_params=_compiler_params(),
    )(*args)
    return y, st


# ---------------------------------------------------------------------------
# Kernel 1 (fused variant): conv1 (1x1) + shortcut 1x1 projection in a single
# pass over x (one HBM read feeds both MXU matmuls), each with BN partials.
# Used when the block has a projection shortcut and stride == 1.
# ---------------------------------------------------------------------------
def _fused_conv1_sc_kernel(x_ref, w1_ref, wsc_ref,
                           y1_ref, sc_ref, st1_ref, stsc_ref):
    a = x_ref[...]
    y1 = jnp.dot(a, w1_ref[...], preferred_element_type=jnp.float32)
    y1_ref[...] = y1.astype(y1_ref.dtype)
    st1_ref[...] = _partial_stats(y1)

    sc = jnp.dot(a, wsc_ref[...], preferred_element_type=jnp.float32)
    sc_ref[...] = sc.astype(sc_ref.dtype)
    stsc_ref[...] = _partial_stats(sc)


def _fused_conv1_shortcut(x_rows, w1, wsc, *, row_block):
    m, cin = x_rows.shape
    p = w1.shape[1]
    e = wsc.shape[1]
    tm = _row_tile(m, row_block)
    grid = (m // tm,)
    out_dt = x_rows.dtype

    return pl.pallas_call(
        _fused_conv1_sc_kernel,
        grid=grid,
        in_specs=[pl.BlockSpec((tm, cin), lambda i: (i, 0)),
                  pl.BlockSpec((cin, p), lambda i: (0, 0)),
                  pl.BlockSpec((cin, e), lambda i: (0, 0))],
        out_specs=(pl.BlockSpec((tm, p), lambda i: (i, 0)),
                   pl.BlockSpec((tm, e), lambda i: (i, 0)),
                   pl.BlockSpec((1, 2, p), lambda i: (i, 0, 0)),
                   pl.BlockSpec((1, 2, e), lambda i: (i, 0, 0))),
        out_shape=(jax.ShapeDtypeStruct((m, p), out_dt),
                   jax.ShapeDtypeStruct((m, e), out_dt),
                   jax.ShapeDtypeStruct((grid[0], 2, p), jnp.float32),
                   jax.ShapeDtypeStruct((grid[0], 2, e), jnp.float32)),
        compiler_params=_compiler_params(),
    )(x_rows, w1, wsc)


# ---------------------------------------------------------------------------
# Kernel 2: fused BN1-affine + ReLU + 3x3 stride-s conv, one image per grid
# step, persistent zero-haloed VMEM scratch (halo-only zero fill), flat
# lane-dense (1, HO*WO, P) output block.
# ---------------------------------------------------------------------------
def _make_conv2_kernel(s, h, w, ho, wo):
    lp = 8  # left halo width -> the interior store starts sublane-aligned

    def kernel(y1_ref, w2_ref, s1_ref, b1_ref, y2_ref, st_ref, pad_ref):
        p = y1_ref.shape[-1]
        dt = pad_ref.dtype

        # Zero only the halo strips (top/bottom rows + left/right bands); the
        # interior is fully overwritten below.  Re-done every step so the
        # kernel stays self-contained under megacore grid sharding.
        pad_ref[0:1, :, :] = jnp.zeros((1, w + 16, p), dt)
        pad_ref[h + 1:h + 2, :, :] = jnp.zeros((1, w + 16, p), dt)
        pad_ref[:, 0:lp, :] = jnp.zeros((h + 2, lp, p), dt)
        pad_ref[:, lp + w:lp + w + 8, :] = jnp.zeros((h + 2, 8, p), dt)

        # BN1 affine + ReLU in f32, stored (cast) into the scratch interior.
        act = jnp.maximum(y1_ref[0] * s1_ref[...] + b1_ref[...], 0.0)
        pad_ref[1:h + 1, lp:lp + w, :] = act.astype(dt)

        # 3x3 conv = 9 shifted (HO*WO, P) @ (P, P) MXU matmuls accumulated
        # into a single f32 accumulator.
        # TODO(synk): derive the kw=0/2 taps from the aligned kw=1 window via
        # pltpu.roll (or im2col K=3P) to avoid sublane-misaligned slices and
        # widen the MXU contraction for P<128 stages.
        acc = jnp.zeros((ho * wo, p), jnp.float32)
        for kh in range(3):
            for kw in range(3):
                c0 = lp + kw - 1
                if s == 1:
                    patch = pad_ref[kh:kh + ho, c0:c0 + wo, :]
                else:
                    patch = pad_ref[pl.ds(kh, ho, stride=s),
                                    pl.ds(c0, wo, stride=s), :]
                acc = acc + jnp.dot(
                    patch.reshape(ho * wo, p),
                    w2_ref[kh, kw],
                    preferred_element_type=jnp.float32)

        y2_ref[...] = acc.reshape(1, ho * wo, p).astype(y2_ref.dtype)
        st_ref[...] = _partial_stats(acc)

    return kernel


def _conv3x3_stats(y1_nhwc, w2, scale1, bias1, *, stride):
    n, h, w, p = y1_nhwc.shape
    s = stride
    ho = (h - 1) // s + 1
    wo = (w - 1) // s + 1
    act_dt = y1_nhwc.dtype
    y2, st = pl.pallas_call(
        _make_conv2_kernel(s, h, w, ho, wo),
        grid=(n,),
        in_specs=[
            pl.BlockSpec((1, h, w, p), lambda i: (i, 0, 0, 0)),
            pl.BlockSpec((3, 3, p, p), lambda i: (0, 0, 0, 0)),
            pl.BlockSpec((1, p), lambda i: (0, 0)),
            pl.BlockSpec((1, p), lambda i: (0, 0)),
        ],
        out_specs=(pl.BlockSpec((1, ho * wo, p), lambda i: (i, 0, 0)),
                   pl.BlockSpec((1, 2, p), lambda i: (i, 0, 0))),
        out_shape=(jax.ShapeDtypeStruct((n, ho * wo, p), act_dt),
                   jax.ShapeDtypeStruct((n, 2, p), jnp.float32)),
        scratch_shapes=[pltpu.VMEM((h + 2, w + 16, p), act_dt)],
        compiler_params=_compiler_params(),
    )(y1_nhwc, w2, scale1, bias1)
    return y2, st


# ---------------------------------------------------------------------------
# Kernel 5: BN3 affine (+ shortcut BN affine) + residual add + ReLU, on a
# lane-dense (N*HO, WO*E) layout so every store is a full-lane vst.
# ---------------------------------------------------------------------------
def _make_bn_add_relu_kernel(has_proj):
    if has_proj:
        def kernel(y_ref, sc_ref, s3_ref, b3_ref, ssc_ref, bsc_ref, o_ref):
            main = y_ref[...] * s3_ref[...] + b3_ref[...]
            short = sc_ref[...] * ssc_ref[...] + bsc_ref[...]
            o_ref[...] = jnp.maximum(main + short, 0.0)
        return kernel

    def kernel(y_ref, sc_ref, s3_ref, b3_ref, o_ref):
        main = y_ref[...] * s3_ref[...] + b3_ref[...]
        o_ref[...] = jnp.maximum(main + sc_ref[...].astype(jnp.float32), 0.0)
    return kernel


def _bn_add_relu(y3_rows, sc_rows, scale3, bias3, scale_sc, bias_sc,
                 *, rows, wo, e, row_block):
    we = wo * e
    y3f = y3_rows.reshape(rows, we)          # contiguous reshape in the wrapper
    scf = sc_rows.reshape(rows, we)
    has_proj = scale_sc is not None

    tr = _row_tile(rows, row_block)
    grid = (rows // tr,)
    tile_spec = pl.BlockSpec((tr, we), lambda i: (i, 0))
    vec_spec = pl.BlockSpec((1, we), lambda i: (0, 0))

    # Per-channel affines tiled along WO so they line up with the flat layout.
    args = [y3f, scf, jnp.tile(scale3, (1, wo)), jnp.tile(bias3, (1, wo))]
    in_specs = [tile_spec, tile_spec, vec_spec, vec_spec]
    if has_proj:
        args += [jnp.tile(scale_sc, (1, wo)), jnp.tile(bias_sc, (1, wo))]
        in_specs += [vec_spec, vec_spec]

    return pl.pallas_call(
        _make_bn_add_relu_kernel(has_proj),
        grid=grid,
        in_specs=in_specs,
        out_specs=tile_spec,
        out_shape=jax.ShapeDtypeStruct((rows, we), jnp.float32),
        compiler_params=_compiler_params(),
    )(*args)


# ---------------------------------------------------------------------------
# O(C) glue between pallas_calls: reduce per-tile partial stats -> BN affine.
# ---------------------------------------------------------------------------
def _finalize_bn(partial_stats, count, gamma, beta, eps=EPS):
    tot = jnp.sum(partial_stats, axis=0)                       # (2, C)
    mean = tot[0] / count
    var = jnp.maximum(tot[1] / count - mean * mean, 0.0)       # biased batch var
    inv = lax.rsqrt(var + eps)
    scale = gamma.reshape(-1) * inv
    bias = beta.reshape(-1) - mean * scale
    return scale.reshape(1, -1), bias.reshape(1, -1)


# ---------------------------------------------------------------------------
# Full Bottleneck forward.
# ---------------------------------------------------------------------------
def bottleneck_forward(x_nchw, params, *, stride=1, use_bf16=True,
                       row_block=None):
    """Pallas forward. x_nchw: (N, Cin, H, W) f32 -> (N, 4*planes, HO, WO)."""
    cdt = jnp.bfloat16 if use_bf16 else jnp.float32
    if row_block is None:
        row_block = _default_row_block()

    # TODO(synk): fold this NCHW->NHWC transpose (and the final one) into the
    # first/last kernels to save two full HBM round trips of the activation.
    x = jnp.transpose(x_nchw, (0, 2, 3, 1)).astype(cdt)            # NHWC, bf16
    n, h, w, cin = x.shape
    p = params["w1"].shape[1]
    e = EXPANSION * p
    s = stride
    ho = (h - 1) // s + 1            # == (H + 2 - 3)//s + 1
    wo = (w - 1) // s + 1
    has_proj = (s != 1) or (cin != e)

    w1 = params["w1"].astype(cdt)
    w2 = params["w2"].astype(cdt)
    w3 = params["w3"].astype(cdt)

    x_rows = x.reshape(n * h * w, cin)

    # --- conv1 (1x1) [+ fused shortcut projection] + BN1 batch stats -------
    sc = scale_sc = bias_sc = None
    if has_proj and s == 1:
        wsc = params["wsc"].astype(cdt)
        y1, sc, st1, stsc = _fused_conv1_shortcut(x_rows, w1, wsc,
                                                  row_block=row_block)
        scale_sc, bias_sc = _finalize_bn(stsc, n * ho * wo,
                                         params["gsc"], params["bsc"])
    else:
        y1, st1 = _matmul_stats(x_rows, w1, row_block=row_block)
    scale1, bias1 = _finalize_bn(st1, n * h * w, params["g1"], params["b1"])

    # --- BN1 affine + ReLU + conv2 (3x3, stride s) + BN2 stats ------------
    y2, st2 = _conv3x3_stats(y1.reshape(n, h, w, p), w2, scale1, bias1,
                             stride=s)
    scale2, bias2 = _finalize_bn(st2, n * ho * wo, params["g2"], params["b2"])

    # --- BN2 affine + ReLU + conv3 (1x1) + BN3 stats ----------------------
    y3, st3 = _matmul_stats(y2.reshape(n * ho * wo, p), w3,
                            pre_scale=scale2, pre_bias=bias2,
                            row_block=row_block)
    scale3, bias3 = _finalize_bn(st3, n * ho * wo, params["g3"], params["b3"])

    # --- shortcut (only when not already fused above) ----------------------
    if sc is None:
        xs = x if s == 1 else x[:, ::s, ::s, :]   # 1x1 stride-s sampling
        xs_rows = xs.reshape(n * ho * wo, cin)
        if has_proj:
            sc, stsc = _matmul_stats(xs_rows, params["wsc"].astype(cdt),
                                     row_block=row_block)
            scale_sc, bias_sc = _finalize_bn(stsc, n * ho * wo,
                                             params["gsc"], params["bsc"])
        else:
            sc = xs_rows                           # identity (cin == e)

    # --- BN3 affine (+ BNsc affine) + residual add + ReLU ------------------
    out_flat = _bn_add_relu(y3, sc, scale3, bias3, scale_sc, bias_sc,
                            rows=n * ho, wo=wo, e=e, row_block=row_block)
    out = out_flat.reshape(n, ho, wo, e)
    return jnp.transpose(out, (0, 3, 1, 2))          # back to NCHW


# ---------------------------------------------------------------------------
# Parameter init + pure-JAX reference (training-mode BatchNorm semantics).
# ---------------------------------------------------------------------------
def init_params(key, in_planes, planes):
    e = EXPANSION * planes
    ks = jax.random.split(key, 12)

    def bn_affine(c, kg, kb):
        g = 1.0 + 0.1 * jax.random.normal(kg, (1, c), jnp.float32)
        b = 0.1 * jax.random.normal(kb, (1, c), jnp.float32)
        return g, b

    g1, b1 = bn_affine(planes, ks[4], ks[5])
    g2, b2 = bn_affine(planes, ks[6], ks[7])
    g3, b3 = bn_affine(e, ks[8], ks[9])
    gsc, bsc = bn_affine(e, ks[10], ks[11])
    return {
        # conv kernels stored as (Cin, Cout) / (kh, kw, Cin, Cout)
        "w1": 0.2 * jax.random.normal(ks[0], (in_planes, planes), jnp.float32),
        "w2": 0.2 * jax.random.normal(ks[1], (3, 3, planes, planes), jnp.float32),
        "w3": 0.2 * jax.random.normal(ks[2], (planes, e), jnp.float32),
        "wsc": 0.2 * jax.random.normal(ks[3], (in_planes, e), jnp.float32),
        "g1": g1, "b1": b1, "g2": g2, "b2": b2,
        "g3": g3, "b3": b3, "gsc": gsc, "bsc": bsc,
    }


def reference_forward(x_nchw, params, *, stride=1):
    """Pure-JAX (XLA, f32 HIGHEST) reference matching the PyTorch module."""
    def conv(x, w_oihw, s, padding):
        return lax.conv_general_dilated(
            x, w_oihw, (s, s), padding,
            dimension_numbers=("NCHW", "OIHW", "NCHW"),
            precision=lax.Precision.HIGHEST)

    def bn(x, g, b):
        mu = jnp.mean(x, axis=(0, 2, 3), keepdims=True)
        var = jnp.mean(jnp.square(x - mu), axis=(0, 2, 3), keepdims=True)
        return ((x - mu) * lax.rsqrt(var + EPS) * g.reshape(1, -1, 1, 1)
                + b.reshape(1, -1, 1, 1))

    p = params["w1"].shape[1]
    e = EXPANSION * p
    cin = x_nchw.shape[1]
    has_proj = (stride != 1) or (cin != e)

    w1 = params["w1"].T[:, :, None, None]                 # (P, Cin, 1, 1)
    w2 = jnp.transpose(params["w2"], (3, 2, 0, 1))        # (P, P, 3, 3)
    w3 = params["w3"].T[:, :, None, None]                 # (E, P, 1, 1)

    out = jax.nn.relu(bn(conv(x_nchw, w1, 1, "VALID"), params["g1"], params["b1"]))
    out = jax.nn.relu(bn(conv(out, w2, stride, [(1, 1), (1, 1)]),
                         params["g2"], params["b2"]))
    out = bn(conv(out, w3, 1, "VALID"), params["g3"], params["b3"])
    if has_proj:
        wsc = params["wsc"].T[:, :, None, None]
        sc = bn(conv(x_nchw, wsc, stride, "VALID"), params["gsc"], params["bsc"])
    else:
        sc = x_nchw
    return jax.nn.relu(out + sc)


if __name__ == "__main__":
    key = jax.random.PRNGKey(0)
    kx, kp, kx2, kp2 = jax.random.split(key, 4)

    # ---- Config A: projection shortcut (Cin != 4*planes), stride 1 --------
    # Exercises the fused conv1+shortcut kernel.
    N, Cin, H, W = 2, 4, 16, 16
    planes, stride = 8, 1
    x = jax.random.normal(kx, (N, Cin, H, W), jnp.float32)
    params = init_params(kp, Cin, planes)
    ref = jax.block_until_ready(reference_forward(x, params, stride=stride))

    # exact-semantics check: f32 intermediates + f32 MXU operands
    out_f32 = jax.block_until_ready(
        bottleneck_forward(x, params, stride=stride, use_bf16=False))
    assert out_f32.shape == (N, EXPANSION * planes, H // stride, W // stride)
    if not np.allclose(np.asarray(out_f32), np.asarray(ref),
                       atol=2e-2, rtol=2e-2):
        raise AssertionError("Pallas f32 output does not match JAX reference")

    # fast path: bf16 activations + MXU operands, f32 accumulation / BN math
    out_bf16 = jax.block_until_ready(
        bottleneck_forward(x, params, stride=stride, use_bf16=True))
    if not np.allclose(np.asarray(out_bf16), np.asarray(ref),
                       atol=1e-1, rtol=1e-1):
        raise AssertionError("Pallas bf16 output does not match JAX reference")

    # ---- Config B: identity shortcut (Cin == 4*planes), stride 1 ----------
    Cin2 = EXPANSION * planes
    x2 = jax.random.normal(kx2, (N, Cin2, H, W), jnp.float32)
    params2 = init_params(kp2, Cin2, planes)
    ref2 = jax.block_until_ready(reference_forward(x2, params2, stride=1))
    out2 = jax.block_until_ready(
        bottleneck_forward(x2, params2, stride=1, use_bf16=False))
    if not np.allclose(np.asarray(out2), np.asarray(ref2),
                       atol=2e-2, rtol=2e-2):
        raise AssertionError("Pallas identity-shortcut output does not match")

    # TODO(synk): the stride>1 path (pl.ds strided conv2 taps, wrapper-side
    # shortcut subsample + separate shortcut matmul) is implemented but not
    # exercised by this small on-device test.
    print("KERNEL_OK")
</pallas_src>

<mosaic_0001>
module attributes {stable_mosaic.version = 11 : i64} {
  func.func @_fused_conv1_sc_kernel(%arg0: i32, %arg1: memref<512x4xf32, #tpu.memory_space<vmem>>, %arg2: memref<4x8xf32, #tpu.memory_space<vmem>>, %arg3: memref<4x32xf32, #tpu.memory_space<vmem>>, %arg4: memref<512x8xf32, #tpu.memory_space<vmem>>, %arg5: memref<512x32xf32, #tpu.memory_space<vmem>>, %arg6: memref<1x2x8xf32, #tpu.memory_space<vmem>>, %arg7: memref<1x2x32xf32, #tpu.memory_space<vmem>>) attributes {dimension_semantics = [#tpu.dimension_semantics<parallel>], iteration_bounds = array<i64: 1>, scalar_prefetch = 0 : i64, scratch_operands = 0 : i64, tpu.core_type = #tpu.core_type<tc>, window_params = [{transform_indices = @transform_0, window_bounds = array<i64: 512, 4>}, {pipeline_mode = #tpu.pipeline_mode<synchronous>, transform_indices = @transform_1, window_bounds = array<i64: 4, 8>}, {pipeline_mode = #tpu.pipeline_mode<synchronous>, transform_indices = @transform_2, window_bounds = array<i64: 4, 32>}, {transform_indices = @transform_3, window_bounds = array<i64: 512, 8>}, {transform_indices = @transform_4, window_bounds = array<i64: 512, 32>}, {transform_indices = @transform_5, window_bounds = array<i64: 1, 2, 8>}, {transform_indices = @transform_6, window_bounds = array<i64: 1, 2, 32>}]} {
    %c0 = arith.constant 0 : index
    %c0_0 = arith.constant 0 : index
    %0 = vector.load %arg1[%c0, %c0_0] : memref<512x4xf32, #tpu.memory_space<vmem>>, vector<512x4xf32>
    %c0_1 = arith.constant 0 : index
    %c0_2 = arith.constant 0 : index
    %1 = vector.load %arg2[%c0_1, %c0_2] : memref<4x8xf32, #tpu.memory_space<vmem>>, vector<4x8xf32>
    %cst = arith.constant dense<0.000000e+00> : vector<512x8xf32>
    %2 = tpu.matmul %0, %1, %cst {dimension_numbers = #tpu.dot_dimension_numbers<[1], [0], [0], [1], [0, 0, 1, 1], [], []>} : vector<512x4xf32>, vector<4x8xf32>, vector<512x8xf32> -> vector<512x8xf32>
    %c0_3 = arith.constant 0 : index
    %c0_4 = arith.constant 0 : index
    %3 = vector.load %arg4[%c0_3, %c0_4] : memref<512x8xf32, #tpu.memory_space<vmem>>, vector<512x8xf32>
    tpu.vector_store %arg4[%c0_3, %c0_4], %2 {strides = array<i32>} : memref<512x8xf32, #tpu.memory_space<vmem>>, vector<512x8xf32>,
    %cst_5 = arith.constant dense<0.000000e+00> : vector<8xf32>
    %4 = vector.multi_reduction <add>, %2, %cst_5 [0] : vector<512x8xf32> to vector<8xf32>
    %5 = vector.shape_cast %4 : vector<8xf32> to vector<1x8xf32>
    %6 = arith.mulf %2, %2 : vector<512x8xf32>
    %cst_6 = arith.constant dense<0.000000e+00> : vector<8xf32>
    %7 = vector.multi_reduction <add>, %6, %cst_6 [0] : vector<512x8xf32> to vector<8xf32>
    %8 = vector.shape_cast %7 : vector<8xf32> to vector<1x8xf32>
    %9 = tpu.concatenate %5, %8 in 0 : vector<1x8xf32>, vector<1x8xf32> -> vector<2x8xf32>
    %10 = vector.shape_cast %9 : vector<2x8xf32> to vector<1x2x8xf32>
    %c0_7 = arith.constant 0 : index
    %c0_8 = arith.constant 0 : index
    %c0_9 = arith.constant 0 : index
    %11 = vector.load %arg6[%c0_7, %c0_8, %c0_9] : memref<1x2x8xf32, #tpu.memory_space<vmem>>, vector<1x2x8xf32>
    tpu.vector_store %arg6[%c0_7, %c0_8, %c0_9], %10 {strides = array<i32>} : memref<1x2x8xf32, #tpu.memory_space<vmem>>, vector<1x2x8xf32>,
    %c0_10 = arith.constant 0 : index
    %c0_11 = arith.constant 0 : index
    %12 = vector.load %arg3[%c0_10, %c0_11] : memref<4x32xf32, #tpu.memory_space<vmem>>, vector<4x32xf32>
    %cst_12 = arith.constant dense<0.000000e+00> : vector<512x32xf32>
    %13 = tpu.matmul %0, %12, %cst_12 {dimension_numbers = #tpu.dot_dimension_numbers<[1], [0], [0], [1], [0, 0, 1, 1], [], []>} : vector<512x4xf32>, vector<4x32xf32>, vector<512x32xf32> -> vector<512x32xf32>
    %c0_13 = arith.constant 0 : index
    %c0_14 = arith.constant 0 : index
    %14 = vector.load %arg5[%c0_13, %c0_14] : memref<512x32xf32, #tpu.memory_space<vmem>>, vector<512x32xf32>
    tpu.vector_store %arg5[%c0_13, %c0_14], %13 {strides = array<i32>} : memref<512x32xf32, #tpu.memory_space<vmem>>, vector<512x32xf32>,
    %cst_15 = arith.constant dense<0.000000e+00> : vector<32xf32>
    %15 = vector.multi_reduction <add>, %13, %cst_15 [0] : vector<512x32xf32> to vector<32xf32>
    %16 = vector.shape_cast %15 : vector<32xf32> to vector<1x32xf32>
    %17 = arith.mulf %13, %13 : vector<512x32xf32>
    %cst_16 = arith.constant dense<0.000000e+00> : vector<32xf32>
    %18 = vector.multi_reduction <add>, %17, %cst_16 [0] : vector<512x32xf32> to vector<32xf32>
    %19 = vector.shape_cast %18 : vector<32xf32> to vector<1x32xf32>
    %20 = tpu.concatenate %16, %19 in 0 : vector<1x32xf32>, vector<1x32xf32> -> vector<2x32xf32>
    %21 = vector.shape_cast %20 : vector<2x32xf32> to vector<1x2x32xf32>
    %c0_17 = arith.constant 0 : index
    %c0_18 = arith.constant 0 : index
    %c0_19 = arith.constant 0 : index
    %22 = vector.load %arg7[%c0_17, %c0_18, %c0_19] : memref<1x2x32xf32, #tpu.memory_space<vmem>>, vector<1x2x32xf32>
    tpu.vector_store %arg7[%c0_17, %c0_18, %c0_19], %21 {strides = array<i32>} : memref<1x2x32xf32, #tpu.memory_space<vmem>>, vector<1x2x32xf32>,
    return
  }
  func.func @transform_0(%arg0: i32) -> (i32, i32) {
    %c0_i32 = arith.constant 0 : i32
    %c0_i32_0 = arith.constant 0 : i32
    return %arg0, %c0_i32 : i32, i32
  }
  func.func @transform_1(%arg0: i32) -> (i32, i32) {
    %c0_i32 = arith.constant 0 : i32
    %c0_i32_0 = arith.constant 0 : i32
    %c0_i32_1 = arith.constant 0 : i32
    return %c0_i32, %c0_i32_0 : i32, i32
  }
  func.func @transform_2(%arg0: i32) -> (i32, i32) {
    %c0_i32 = arith.constant 0 : i32
    %c0_i32_0 = arith.constant 0 : i32
    %c0_i32_1 = arith.constant 0 : i32
    return %c0_i32, %c0_i32_0 : i32, i32
  }
  func.func @transform_3(%arg0: i32) -> (i32, i32) {
    %c0_i32 = arith.constant 0 : i32
    %c0_i32_0 = arith.constant 0 : i32
    return %arg0, %c0_i32 : i32, i32
  }
  func.func @transform_4(%arg0: i32) -> (i32, i32) {
    %c0_i32 = arith.constant 0 : i32
    %c0_i32_0 = arith.constant 0 : i32
    return %arg0, %c0_i32 : i32, i32
  }
  func.func @transform_5(%arg0: i32) -> (i32, i32, i32) {
    %c0_i32 = arith.constant 0 : i32
    %c0_i32_0 = arith.constant 0 : i32
    %c0_i32_1 = arith.constant 0 : i32
    return %arg0, %c0_i32, %c0_i32_0 : i32, i32, i32
  }
  func.func @transform_6(%arg0: i32) -> (i32, i32, i32) {
    %c0_i32 = arith.constant 0 : i32
    %c0_i32_0 = arith.constant 0 : i32
    %c0_i32_1 = arith.constant 0 : i32
    return %arg0, %c0_i32, %c0_i32_0 : i32, i32, i32
  }
}

</mosaic_0001>

<llo_original>
// kernel: tpu_custom_call.1
$region0: #{tpu_custom_call.1}
  #allocation0 [shape = 'u32[]', space=smem, size = 0x4, offset = 0x4, fixed_abs, tag = 'smem constant byte address 0x4 - core index']
  #allocation1 [shape = 'u32[72,128]{1,0:T(1,128)}', space=vmem, size = 0x9000, scoped, tag = 'internal scratch']
  %s0 = inlined_call_operand.vmem [shape: f32[512,4], index: 0, kind: input, shape index: {}]
  %s1 = inlined_call_operand.vmem [shape: f32[4,8], index: 1, kind: input, shape index: {}]
  %s2 = inlined_call_operand.vmem [shape: f32[4,32], index: 2, kind: input, shape index: {}]
  %s3 = inlined_call_operand.vmem [shape: f32[512,8], index: 3, kind: output, shape index: {0}]
  %s4 = inlined_call_operand.vmem [shape: f32[512,32], index: 4, kind: output, shape index: {1}]
  %s5 = inlined_call_operand.hbm [shape: f32[1,2,8], index: 5, kind: output, shape index: {2}]
  %s6 = inlined_call_operand.hbm [shape: f32[1,2,32], index: 6, kind: output, shape index: {3}]
  %7 = xla_tuple %s3, %s4, %s5, %s6
  %s8 = sld [smem:[#allocation0]]
  $region46: #{tpu_custom_call.1} parent=0
    _
  %s10 = ssub.s32 1, %s8
  %s11 = scalar_select 0, %s10, %s8
  $region1: #{tpu_custom_call.1} parent=0
    #allocation2 [shape = 'u8[1024]{0}', space=vmem, size = 0x400, scoped, tag = 'output window, operand 2, single buffered']
    #allocation3 [shape = 's32[1]{0}', space=sflag, size = 0x4, scoped, tag = 'scoped memory for tpu_custom_call.1']
    #allocation4 [shape = 'u8[1024]{0}', space=vmem, size = 0x400, scoped, tag = 'output window, operand 3, single buffered']
    #allocation5 [shape = 's32[1]{0}', space=sflag, size = 0x4, scoped, tag = 'scoped memory for tpu_custom_call.1']
    %12 = vsyncpa [#allocation3], 0
    %13 = vsyncpa [#allocation5], 0
    // Predicated region
    $region2: #{tpu_custom_call.1} parent=1 // pred_check
      _
    $region3: #{tpu_custom_call.1} parent=1 // pred_check_branch
      %15 = sbr.rel (0) target = $region5
    $region4: #{tpu_custom_call.1} parent=1 // pred_region
      _
    $region5: #{tpu_custom_call.1} parent=1 // pred_fallthru
      _
    // Predicated region
    $region6: #{tpu_custom_call.1} parent=1 // pred_check
      _
    $region7: #{tpu_custom_call.1} parent=1 // pred_check_branch
      %17 = sbr.rel (0) target = $region9
    $region8: #{tpu_custom_call.1} parent=1 // pred_region
      _
    $region9: #{tpu_custom_call.1} parent=1 // pred_fallthru
      _
    // Predicated region
    $region10: #{tpu_custom_call.1} parent=1 // pred_check
      _
    $region11: #{tpu_custom_call.1} parent=1 // pred_check_branch
      %19 = sbr.rel (0) target = $region13
    $region12: #{tpu_custom_call.1} parent=1 // pred_region
      _
    $region13: #{tpu_custom_call.1} parent=1 // pred_fallthru
      _
    %v20 = vld [vmem:[%s0] sm:$0xff]
    %v21 = vld [vmem:[%s0 + $0x8] sm:$0xff]
    %v22 = vld [vmem:[%s0 + $0x10] sm:$0xff]
    %v23 = vld [vmem:[%s0 + $0x18] sm:$0xff]
    %v24 = vld [vmem:[%s0 + $0x20] sm:$0xff]
    %v25 = vld [vmem:[%s0 + $0x28] sm:$0xff]
    %v26 = vld [vmem:[%s0 + $0x30] sm:$0xff]
    %v27 = vld [vmem:[%s0 + $0x38] sm:$0xff]
    %v28 = vld [vmem:[%s0 + $0x40] sm:$0xff]
    %v29 = vld [vmem:[%s0 + $0x48] sm:$0xff]
    %v30 = vld [vmem:[%s0 + $0x50] sm:$0xff]
    %v31 = vld [vmem:[%s0 + $0x58] sm:$0xff]
    %v32 = vld [vmem:[%s0 + $0x60] sm:$0xff]
    %v33 = vld [vmem:[%s0 + $0x68] sm:$0xff]
    %v34 = vld [vmem:[%s0 + $0x70] sm:$0xff]
    %v35 = vld [vmem:[%s0 + $0x78] sm:$0xff]
    %v36 = vld [vmem:[%s0 + $0x80] sm:$0xff]
    %v37 = vld [vmem:[%s0 + $0x88] sm:$0xff]
    %v38 = vld [vmem:[%s0 + $0x90] sm:$0xff]
    %v39 = vld [vmem:[%s0 + $0x98] sm:$0xff]
    %v40 = vld [vmem:[%s0 + $0xa0] sm:$0xff]
    %v41 = vld [vmem:[%s0 + $0xa8] sm:$0xff]
    %v42 = vld [vmem:[%s0 + $0xb0] sm:$0xff]
    %v43 = vld [vmem:[%s0 + $0xb8] sm:$0xff]
    %v44 = vld [vmem:[%s0 + $0xc0] sm:$0xff]
    %v45 = vld [vmem:[%s0 + $0xc8] sm:$0xff]
    %v46 = vld [vmem:[%s0 + $0xd0] sm:$0xff]
    %v47 = vld [vmem:[%s0 + $0xd8] sm:$0xff]
    %v48 = vld [vmem:[%s0 + $0xe0] sm:$0xff]
    %v49 = vld [vmem:[%s0 + $0xe8] sm:$0xff]
    %v50 = vld [vmem:[%s0 + $0xf0] sm:$0xff]
    %v51 = vld [vmem:[%s0 + $0xf8] sm:$0xff]
    %v52 = vld [vmem:[%s0 + $0x100] sm:$0xff]
    %v53 = vld [vmem:[%s0 + $0x108] sm:$0xff]
    %v54 = vld [vmem:[%s0 + $0x110] sm:$0xff]
    %v55 = vld [vmem:[%s0 + $0x118] sm:$0xff]
    %v56 = vld [vmem:[%s0 + $0x120] sm:$0xff]
    %v57 = vld [vmem:[%s0 + $0x128] sm:$0xff]
    %v58 = vld [vmem:[%s0 + $0x130] sm:$0xff]
    %v59 = vld [vmem:[%s0 + $0x138] sm:$0xff]
    %v60 = vld [vmem:[%s0 + $0x140] sm:$0xff]
    %v61 = vld [vmem:[%s0 + $0x148] sm:$0xff]
    %v62 = vld [vmem:[%s0 + $0x150] sm:$0xff]
    %v63 = vld [vmem:[%s0 + $0x158] sm:$0xff]
    %v64 = vld [vmem:[%s0 + $0x160] sm:$0xff]
    %v65 = vld [vmem:[%s0 + $0x168] sm:$0xff]
    %v66 = vld [vmem:[%s0 + $0x170] sm:$0xff]
    %v67 = vld [vmem:[%s0 + $0x178] sm:$0xff]
    %v68 = vld [vmem:[%s0 + $0x180] sm:$0xff]
    %v69 = vld [vmem:[%s0 + $0x188] sm:$0xff]
    %v70 = vld [vmem:[%s0 + $0x190] sm:$0xff]
    %v71 = vld [vmem:[%s0 + $0x198] sm:$0xff]
    %v72 = vld [vmem:[%s0 + $0x1a0] sm:$0xff]
    %v73 = vld [vmem:[%s0 + $0x1a8] sm:$0xff]
    %v74 = vld [vmem:[%s0 + $0x1b0] sm:$0xff]
    %v75 = vld [vmem:[%s0 + $0x1b8] sm:$0xff]
    %v76 = vld [vmem:[%s0 + $0x1c0] sm:$0xff]
    %v77 = vld [vmem:[%s0 + $0x1c8] sm:$0xff]
    %v78 = vld [vmem:[%s0 + $0x1d0] sm:$0xff]
    %v79 = vld [vmem:[%s0 + $0x1d8] sm:$0xff]
    %v80 = vld [vmem:[%s0 + $0x1e0] sm:$0xff]
    %v81 = vld [vmem:[%s0 + $0x1e8] sm:$0xff]
    %v82 = vld [vmem:[%s0 + $0x1f0] sm:$0xff]
    %v83 = vld [vmem:[%s0 + $0x1f8] sm:$0xff]
    %v84 = vld [vmem:[%s1] sm:$0xf]
    %vm85 = vcmask 31744
    %v87 = vsel %vm85, %v20, 0
    %v90 = vsel %vm85, %v21, 0
    %v93 = vsel %vm85, %v22, 0
    %v96 = vsel %vm85, %v23, 0
    %v99 = vsel %vm85, %v24, 0
    %v102 = vsel %vm85, %v25, 0
    %v105 = vsel %vm85, %v26, 0
    %v108 = vsel %vm85, %v27, 0
    %v111 = vsel %vm85, %v28, 0
    %v114 = vsel %vm85, %v29, 0
    %v117 = vsel %vm85, %v30, 0
    %v120 = vsel %vm85, %v31, 0
    %v123 = vsel %vm85, %v32, 0
    %v126 = vsel %vm85, %v33, 0
    %v129 = vsel %vm85, %v34, 0
    %v132 = vsel %vm85, %v35, 0
    %v135 = vsel %vm85, %v36, 0
    %v138 = vsel %vm85, %v37, 0
    %v141 = vsel %vm85, %v38, 0
    %v144 = vsel %vm85, %v39, 0
    %v147 = vsel %vm85, %v40, 0
    %v150 = vsel %vm85, %v41, 0
    %v153 = vsel %vm85, %v42, 0
    %v156 = vsel %vm85, %v43, 0
    %v159 = vsel %vm85, %v44, 0
    %v162 = vsel %vm85, %v45, 0
    %v165 = vsel %vm85, %v46, 0
    %v168 = vsel %vm85, %v47, 0
    %v171 = vsel %vm85, %v48, 0
    %v174 = vsel %vm85, %v49, 0
    %v177 = vsel %vm85, %v50, 0
    %v180 = vsel %vm85, %v51, 0
    %v183 = vsel %vm85, %v52, 0
    %v186 = vsel %vm85, %v53, 0
    %v189 = vsel %vm85, %v54, 0
    %v192 = vsel %vm85, %v55, 0
    %v195 = vsel %vm85, %v56, 0
    %v198 = vsel %vm85, %v57, 0
    %v201 = vsel %vm85, %v58, 0
    %v204 = vsel %vm85, %v59, 0
    %v207 = vsel %vm85, %v60, 0
    %v210 = vsel %vm85, %v61, 0
    %v213 = vsel %vm85, %v62, 0
    %v216 = vsel %vm85, %v63, 0
    %v219 = vsel %vm85, %v64, 0
    %v222 = vsel %vm85, %v65, 0
    %v225 = vsel %vm85, %v66, 0
    %v228 = vsel %vm85, %v67, 0
    %v231 = vsel %vm85, %v68, 0
    %v234 = vsel %vm85, %v69, 0
    %v237 = vsel %vm85, %v70, 0
    %v240 = vsel %vm85, %v71, 0
    %v243 = vsel %vm85, %v72, 0
    %v246 = vsel %vm85, %v73, 0
    %v249 = vsel %vm85, %v74, 0
    %v252 = vsel %vm85, %v75, 0
    %v255 = vsel %vm85, %v76, 0
    %v258 = vsel %vm85, %v77, 0
    %v261 = vsel %vm85, %v78, 0
    %v264 = vsel %vm85, %v79, 0
    %v267 = vsel %vm85, %v80, 0
    %v270 = vsel %vm85, %v81, 0
    %v273 = vsel %vm85, %v82, 0
    %v276 = vsel %vm85, %v83, 0
    %vm278 = vcmask 1043456
    %v280 = vsel %vm278, %v84, 0
    %282 = vmatpush.msra.mxu0 0.0
    %283 = vmatpush.msra.mxu0 0.0
    %284 = vmatpush.msra.mxu0 0.0
    %285 = vmatpush.msra.mxu0 0.0
    %286 = vmatpush.msra.mxu0 0.0
    %287 = vmatpush.msra.mxu0 0.0
    %288 = vmatpush.msra.mxu0 0.0
    %289 = vmatpush.msra.mxu0 0.0
    %290 = vmatpush.msra.mxu0 0.0
    %291 = vmatpush.msra.mxu0 0.0
    %292 = vmatpush.msra.mxu0 0.0
    %293 = vmatpush.msra.mxu0 0.0
    %294 = vmatpush.msra.mxu0 0.0
    %295 = vmatpush.msra.mxu0 0.0
    %296 = vmatpush.msra.mxu0 0.0
    %297 = vmatpush.msra.mxu0 %v280
    %298 = vmatmul.f32.gmra.mxu0 %v87
    %v299 = vpop.f32.mrf.mxu0
    %v300 = vadd.f32 0.0, %v299
    %301 = vmatmul.f32.gmra.mxu0 %v90
    %v302 = vpop.f32.mrf.mxu0
    %v303 = vadd.f32 0.0, %v302
    %304 = vmatmul.f32.gmra.mxu0 %v93
    %v305 = vpop.f32.mrf.mxu0
    %v306 = vadd.f32 0.0, %v305
    %307 = vmatmul.f32.gmra.mxu0 %v96
    %v308 = vpop.f32.mrf.mxu0
    %v309 = vadd.f32 0.0, %v308
    %310 = vmatmul.f32.gmra.mxu0 %v99
    %v311 = vpop.f32.mrf.mxu0
    %v312 = vadd.f32 0.0, %v311
    %313 = vmatmul.f32.gmra.mxu0 %v102
    %v314 = vpop.f32.mrf.mxu0
    %v315 = vadd.f32 0.0, %v314
    %316 = vmatmul.f32.gmra.mxu0 %v105
    %v317 = vpop.f32.mrf.mxu0
    %v318 = vadd.f32 0.0, %v317
    %319 = vmatmul.f32.gmra.mxu0 %v108
    %v320 = vpop.f32.mrf.mxu0
    %v321 = vadd.f32 0.0, %v320
    %322 = vmatmul.f32.gmra.mxu0 %v111
    %v323 = vpop.f32.mrf.mxu0
    %v324 = vadd.f32 0.0, %v323
    %325 = vmatmul.f32.gmra.mxu0 %v114
    %v326 = vpop.f32.mrf.mxu0
    %v327 = vadd.f32 0.0, %v326
    %328 = vmatmul.f32.gmra.mxu0 %v117
    %v329 = vpop.f32.mrf.mxu0
    %v330 = vadd.f32 0.0, %v329
    %331 = vmatmul.f32.gmra.mxu0 %v120
    %v332 = vpop.f32.mrf.mxu0
    %v333 = vadd.f32 0.0, %v332
    %334 = vmatmul.f32.gmra.mxu0 %v123
    %v335 = vpop.f32.mrf.mxu0
    %v336 = vadd.f32 0.0, %v335
    %337 = vmatmul.f32.gmra.mxu0 %v126
    %v338 = vpop.f32.mrf.mxu0
    %v339 = vadd.f32 0.0, %v338
    %340 = vmatmul.f32.gmra.mxu0 %v129
    %v341 = vpop.f32.mrf.mxu0
    %v342 = vadd.f32 0.0, %v341
    %343 = vmatmul.f32.gmra.mxu0 %v132
    %v344 = vpop.f32.mrf.mxu0
    %v345 = vadd.f32 0.0, %v344
    %346 = vmatmul.f32.gmra.mxu0 %v135
    %v347 = vpop.f32.mrf.mxu0
    %v348 = vadd.f32 0.0, %v347
    %349 = vmatmul.f32.gmra.mxu0 %v138
    %v350 = vpop.f32.mrf.mxu0
    %v351 = vadd.f32 0.0, %v350
    %352 = vmatmul.f32.gmra.mxu0 %v141
    %v353 = vpop.f32.mrf.mxu0
    %v354 = vadd.f32 0.0, %v353
    %355 = vmatmul.f32.gmra.mxu0 %v144
    %v356 = vpop.f32.mrf.mxu0
    %v357 = vadd.f32 0.0, %v356
    %358 = vmatmul.f32.gmra.mxu0 %v147
    %v359 = vpop.f32.mrf.mxu0
    %v360 = vadd.f32 0.0, %v359
    %361 = vmatmul.f32.gmra.mxu0 %v150
    %v362 = vpop.f32.mrf.mxu0
    %v363 = vadd.f32 0.0, %v362
    %364 = vmatmul.f32.gmra.mxu0 %v153
    %v365 = vpop.f32.mrf.mxu0
    %v366 = vadd.f32 0.0, %v365
    %367 = vmatmul.f32.gmra.mxu0 %v156
    %v368 = vpop.f32.mrf.mxu0
    %v369 = vadd.f32 0.0, %v368
    %370 = vmatmul.f32.gmra.mxu0 %v159
    %v371 = vpop.f32.mrf.mxu0
    %v372 = vadd.f32 0.0, %v371
    %373 = vmatmul.f32.gmra.mxu0 %v162
    %v374 = vpop.f32.mrf.mxu0
    %v375 = vadd.f32 0.0, %v374
    %376 = vmatmul.f32.gmra.mxu0 %v165
    %v377 = vpop.f32.mrf.mxu0
    %v378 = vadd.f32 0.0, %v377
    %379 = vmatmul.f32.gmra.mxu0 %v168
    %v380 = vpop.f32.mrf.mxu0
    %v381 = vadd.f32 0.0, %v380
    %382 = vmatmul.f32.gmra.mxu0 %v171
    %v383 = vpop.f32.mrf.mxu0
    %v384 = vadd.f32 0.0, %v383
    %385 = vmatmul.f32.gmra.mxu0 %v174
    %v386 = vpop.f32.mrf.mxu0
    %v387 = vadd.f32 0.0, %v386
    %388 = vmatmul.f32.gmra.mxu0 %v177
    %v389 = vpop.f32.mrf.mxu0
    %v390 = vadd.f32 0.0, %v389
    %391 = vmatmul.f32.gmra.mxu0 %v180
    %v392 = vpop.f32.mrf.mxu0
    %v393 = vadd.f32 0.0, %v392
    %394 = vmatmul.f32.gmra.mxu0 %v183
    %v395 = vpop.f32.mrf.mxu0
    %v396 = vadd.f32 0.0, %v395
    %397 = vmatmul.f32.gmra.mxu0 %v186
    %v398 = vpop.f32.mrf.mxu0
    %v399 = vadd.f32 0.0, %v398
    %400 = vmatmul.f32.gmra.mxu0 %v189
    %v401 = vpop.f32.mrf.mxu0
    %v402 = vadd.f32 0.0, %v401
    %403 = vmatmul.f32.gmra.mxu0 %v192
    %v404 = vpop.f32.mrf.mxu0
    %v405 = vadd.f32 0.0, %v404
    %406 = vmatmul.f32.gmra.mxu0 %v195
    %v407 = vpop.f32.mrf.mxu0
    %v408 = vadd.f32 0.0, %v407
    %409 = vmatmul.f32.gmra.mxu0 %v198
    %v410 = vpop.f32.mrf.mxu0
    %v411 = vadd.f32 0.0, %v410
    %412 = vmatmul.f32.gmra.mxu0 %v201
    %v413 = vpop.f32.mrf.mxu0
    %v414 = vadd.f32 0.0, %v413
    %415 = vmatmul.f32.gmra.mxu0 %v204
    %v416 = vpop.f32.mrf.mxu0
    %v417 = vadd.f32 0.0, %v416
    %418 = vmatmul.f32.gmra.mxu0 %v207
    %v419 = vpop.f32.mrf.mxu0
    %v420 = vadd.f32 0.0, %v419
    %421 = vmatmul.f32.gmra.mxu0 %v210
    %v422 = vpop.f32.mrf.mxu0
    %v423 = vadd.f32 0.0, %v422
    %424 = vmatmul.f32.gmra.mxu0 %v213
    %v425 = vpop.f32.mrf.mxu0
    %v426 = vadd.f32 0.0, %v425
    %427 = vmatmul.f32.gmra.mxu0 %v216
    %v428 = vpop.f32.mrf.mxu0
    %v429 = vadd.f32 0.0, %v428
    %430 = vmatmul.f32.gmra.mxu0 %v219
    %v431 = vpop.f32.mrf.mxu0
    %v432 = vadd.f32 0.0, %v431
    %433 = vmatmul.f32.gmra.mxu0 %v222
    %v434 = vpop.f32.mrf.mxu0
    %v435 = vadd.f32 0.0, %v434
    %436 = vmatmul.f32.gmra.mxu0 %v225
    %v437 = vpop.f32.mrf.mxu0
    %v438 = vadd.f32 0.0, %v437
    %439 = vmatmul.f32.gmra.mxu0 %v228
    %v440 = vpop.f32.mrf.mxu0
    %v441 = vadd.f32 0.0, %v440
    %442 = vmatmul.f32.gmra.mxu0 %v231
    %v443 = vpop.f32.mrf.mxu0
    %v444 = vadd.f32 0.0, %v443
    %445 = vmatmul.f32.gmra.mxu0 %v234
    %v446 = vpop.f32.mrf.mxu0
    %v447 = vadd.f32 0.0, %v446
    %448 = vmatmul.f32.gmra.mxu0 %v237
    %v449 = vpop.f32.mrf.mxu0
    %v450 = vadd.f32 0.0, %v449
    %451 = vmatmul.f32.gmra.mxu0 %v240
    %v452 = vpop.f32.mrf.mxu0
    %v453 = vadd.f32 0.0, %v452
    %454 = vmatmul.f32.gmra.mxu0 %v243
    %v455 = vpop.f32.mrf.mxu0
    %v456 = vadd.f32 0.0, %v455
    %457 = vmatmul.f32.gmra.mxu0 %v246
    %v458 = vpop.f32.mrf.mxu0
    %v459 = vadd.f32 0.0, %v458
    %460 = vmatmul.f32.gmra.mxu0 %v249
    %v461 = vpop.f32.mrf.mxu0
    %v462 = vadd.f32 0.0, %v461
    %463 = vmatmul.f32.gmra.mxu0 %v252
    %v464 = vpop.f32.mrf.mxu0
    %v465 = vadd.f32 0.0, %v464
    %466 = vmatmul.f32.gmra.mxu0 %v255
    %v467 = vpop.f32.mrf.mxu0
    %v468 = vadd.f32 0.0, %v467
    %469 = vmatmul.f32.gmra.mxu0 %v258
    %v470 = vpop.f32.mrf.mxu0
    %v471 = vadd.f32 0.0, %v470
    %472 = vmatmul.f32.gmra.mxu0 %v261
    %v473 = vpop.f32.mrf.mxu0
    %v474 = vadd.f32 0.0, %v473
    %475 = vmatmul.f32.gmra.mxu0 %v264
    %v476 = vpop.f32.mrf.mxu0
    %v477 = vadd.f32 0.0, %v476
    %478 = vmatmul.f32.gmra.mxu0 %v267
    %v479 = vpop.f32.mrf.mxu0
    %v480 = vadd.f32 0.0, %v479
    %481 = vmatmul.f32.gmra.mxu0 %v270
    %v482 = vpop.f32.mrf.mxu0
    %v483 = vadd.f32 0.0, %v482
    %484 = vmatmul.f32.gmra.mxu0 %v273
    %v485 = vpop.f32.mrf.mxu0
    %v486 = vadd.f32 0.0, %v485
    %487 = vmatmul.f32.gmra.mxu0 %v276
    %v488 = vpop.f32.mrf.mxu0
    %v489 = vadd.f32 0.0, %v488
    %490 = vdwg.mxu0
    %vm491 = vcmask 64512
    %492 = vst.msk [vmem:[%s3] sm:$0xff] %vm491, %v300
    %493 = vst.msk [vmem:[%s3 + $0x8] sm:$0xff] %vm491, %v303
    %494 = vst.msk [vmem:[%s3 + $0x10] sm:$0xff] %vm491, %v306
    %495 = vst.msk [vmem:[%s3 + $0x18] sm:$0xff] %vm491, %v309
    %496 = vst.msk [vmem:[%s3 + $0x20] sm:$0xff] %vm491, %v312
    %497 = vst.msk [vmem:[%s3 + $0x28] sm:$0xff] %vm491, %v315
    %498 = vst.msk [vmem:[%s3 + $0x30] sm:$0xff] %vm491, %v318
    %499 = vst.msk [vmem:[%s3 + $0x38] sm:$0xff] %vm491, %v321
    %500 = vst.msk [vmem:[%s3 + $0x40] sm:$0xff] %vm491, %v324
    %501 = vst.msk [vmem:[%s3 + $0x48] sm:$0xff] %vm491, %v327
    %502 = vst.msk [vmem:[%s3 + $0x50] sm:$0xff] %vm491, %v330
    %503 = vst.msk [vmem:[%s3 + $0x58] sm:$0xff] %vm491, %v333
    %504 = vst.msk [vmem:[%s3 + $0x60] sm:$0xff] %vm491, %v336
    %505 = vst.msk [vmem:[%s3 + $0x68] sm:$0xff] %vm491, %v339
    %506 = vst.msk [vmem:[%s3 + $0x70] sm:$0xff] %vm491, %v342
    %507 = vst.msk [vmem:[%s3 + $0x78] sm:$0xff] %vm491, %v345
    %508 = vst.msk [vmem:[%s3 + $0x80] sm:$0xff] %vm491, %v348
    %509 = vst.msk [vmem:[%s3 + $0x88] sm:$0xff] %vm491, %v351
    %510 = vst.msk [vmem:[%s3 + $0x90] sm:$0xff] %vm491, %v354
    %511 = vst.msk [vmem:[%s3 + $0x98] sm:$0xff] %vm491, %v357
    %512 = vst.msk [vmem:[%s3 + $0xa0] sm:$0xff] %vm491, %v360
    %513 = vst.msk [vmem:[%s3 + $0xa8] sm:$0xff] %vm491, %v363
    %514 = vst.msk [vmem:[%s3 + $0xb0] sm:$0xff] %vm491, %v366
    %515 = vst.msk [vmem:[%s3 + $0xb8] sm:$0xff] %vm491, %v369
    %516 = vst.msk [vmem:[%s3 + $0xc0] sm:$0xff] %vm491, %v372
    %517 = vst.msk [vmem:[%s3 + $0xc8] sm:$0xff] %vm491, %v375
    %518 = vst.msk [vmem:[%s3 + $0xd0] sm:$0xff] %vm491, %v378
    %519 = vst.msk [vmem:[%s3 + $0xd8] sm:$0xff] %vm491, %v381
    %520 = vst.msk [vmem:[%s3 + $0xe0] sm:$0xff] %vm491, %v384
    %521 = vst.msk [vmem:[%s3 + $0xe8] sm:$0xff] %vm491, %v387
    %522 = vst.msk [vmem:[%s3 + $0xf0] sm:$0xff] %vm491, %v390
    %523 = vst.msk [vmem:[%s3 + $0xf8] sm:$0xff] %vm491, %v393
    %524 = vst.msk [vmem:[%s3 + $0x100] sm:$0xff] %vm491, %v396
    %525 = vst.msk [vmem:[%s3 + $0x108] sm:$0xff] %vm491, %v399
    %526 = vst.msk [vmem:[%s3 + $0x110] sm:$0xff] %vm491, %v402
    %527 = vst.msk [vmem:[%s3 + $0x118] sm:$0xff] %vm491, %v405
    %528 = vst.msk [vmem:[%s3 + $0x120] sm:$0xff] %vm491, %v408
    %529 = vst.msk [vmem:[%s3 + $0x128] sm:$0xff] %vm491, %v411
    %530 = vst.msk [vmem:[%s3 + $0x130] sm:$0xff] %vm491, %v414
    %531 = vst.msk [vmem:[%s3 + $0x138] sm:$0xff] %vm491, %v417
    %532 = vst.msk [vmem:[%s3 + $0x140] sm:$0xff] %vm491, %v420
    %533 = vst.msk [vmem:[%s3 + $0x148] sm:$0xff] %vm491, %v423
    %534 = vst.msk [vmem:[%s3 + $0x150] sm:$0xff] %vm491, %v426
    %535 = vst.msk [vmem:[%s3 + $0x158] sm:$0xff] %vm491, %v429
    %536 = vst.msk [vmem:[%s3 + $0x160] sm:$0xff] %vm491, %v432
    %537 = vst.msk [vmem:[%s3 + $0x168] sm:$0xff] %vm491, %v435
    %538 = vst.msk [vmem:[%s3 + $0x170] sm:$0xff] %vm491, %v438
    %539 = vst.msk [vmem:[%s3 + $0x178] sm:$0xff] %vm491, %v441
    %540 = vst.msk [vmem:[%s3 + $0x180] sm:$0xff] %vm491, %v444
    %541 = vst.msk [vmem:[%s3 + $0x188] sm:$0xff] %vm491, %v447
    %542 = vst.msk [vmem:[%s3 + $0x190] sm:$0xff] %vm491, %v450
    %543 = vst.msk [vmem:[%s3 + $0x198] sm:$0xff] %vm491, %v453
    %544 = vst.msk [vmem:[%s3 + $0x1a0] sm:$0xff] %vm491, %v456
    %545 = vst.msk [vmem:[%s3 + $0x1a8] sm:$0xff] %vm491, %v459
    %546 = vst.msk [vmem:[%s3 + $0x1b0] sm:$0xff] %vm491, %v462
    %547 = vst.msk [vmem:[%s3 + $0x1b8] sm:$0xff] %vm491, %v465
    %548 = vst.msk [vmem:[%s3 + $0x1c0] sm:$0xff] %vm491, %v468
    %549 = vst.msk [vmem:[%s3 + $0x1c8] sm:$0xff] %vm491, %v471
    %550 = vst.msk [vmem:[%s3 + $0x1d0] sm:$0xff] %vm491, %v474
    %551 = vst.msk [vmem:[%s3 + $0x1d8] sm:$0xff] %vm491, %v477
    %552 = vst.msk [vmem:[%s3 + $0x1e0] sm:$0xff] %vm491, %v480
    %553 = vst.msk [vmem:[%s3 + $0x1e8] sm:$0xff] %vm491, %v483
    %554 = vst.msk [vmem:[%s3 + $0x1f0] sm:$0xff] %vm491, %v486
    %555 = vst.msk [vmem:[%s3 + $0x1f8] sm:$0xff] %vm491, %v489
    %v556 = vsel %vm491, %v300, 0.0
    %v557 = vsel %vm491, %v303, 0.0
    %v558 = vadd.f32 %v556, %v557
    %v559 = vsel %vm491, %v306, 0.0
    %v560 = vadd.f32 %v558, %v559
    %v561 = vsel %vm491, %v309, 0.0
    %v562 = vadd.f32 %v560, %v561
    %v563 = vsel %vm491, %v312, 0.0
    %v564 = vadd.f32 %v562, %v563
    %v565 = vsel %vm491, %v315, 0.0
    %v566 = vadd.f32 %v564, %v565
    %v567 = vsel %vm491, %v318, 0.0
    %v568 = vadd.f32 %v566, %v567
    %v569 = vsel %vm491, %v321, 0.0
    %v570 = vadd.f32 %v568, %v569
    %v571 = vsel %vm491, %v324, 0.0
    %v572 = vadd.f32 %v570, %v571
    %v573 = vsel %vm491, %v327, 0.0
    %v574 = vadd.f32 %v572, %v573
    %v575 = vsel %vm491, %v330, 0.0
    %v576 = vadd.f32 %v574, %v575
    %v577 = vsel %vm491, %v333, 0.0
    %v578 = vadd.f32 %v576, %v577
    %v579 = vsel %vm491, %v336, 0.0
    %v580 = vadd.f32 %v578, %v579
    %v581 = vsel %vm491, %v339, 0.0
    %v582 = vadd.f32 %v580, %v581
    %v583 = vsel %vm491, %v342, 0.0
    %v584 = vadd.f32 %v582, %v583
    %v585 = vsel %vm491, %v345, 0.0
    %v586 = vadd.f32 %v584, %v585
    %v587 = vsel %vm491, %v348, 0.0
    %v588 = vadd.f32 %v586, %v587
    %v589 = vsel %vm491, %v351, 0.0
    %v590 = vadd.f32 %v588, %v589
    %v591 = vsel %vm491, %v354, 0.0
    %v592 = vadd.f32 %v590, %v591
    %v593 = vsel %vm491, %v357, 0.0
    %v594 = vadd.f32 %v592, %v593
    %v595 = vsel %vm491, %v360, 0.0
    %v596 = vadd.f32 %v594, %v595
    %v597 = vsel %vm491, %v363, 0.0
    %v598 = vadd.f32 %v596, %v597
    %v599 = vsel %vm491, %v366, 0.0
    %v600 = vadd.f32 %v598, %v599
    %v601 = vsel %vm491, %v369, 0.0
    %v602 = vadd.f32 %v600, %v601
    %v603 = vsel %vm491, %v372, 0.0
    %v604 = vadd.f32 %v602, %v603
    %v605 = vsel %vm491, %v375, 0.0
    %v606 = vadd.f32 %v604, %v605
    %v607 = vsel %vm491, %v378, 0.0
    %v608 = vadd.f32 %v606, %v607
    %v609 = vsel %vm491, %v381, 0.0
    %v610 = vadd.f32 %v608, %v609
    %v611 = vsel %vm491, %v384, 0.0
    %v612 = vadd.f32 %v610, %v611
    %v613 = vsel %vm491, %v387, 0.0
    %v614 = vadd.f32 %v612, %v613
    %v615 = vsel %vm491, %v390, 0.0
    %v616 = vadd.f32 %v614, %v615
    %v617 = vsel %vm491, %v393, 0.0
    %v618 = vadd.f32 %v616, %v617
    %v619 = vsel %vm491, %v396, 0.0
    %v620 = vadd.f32 %v618, %v619
    %v621 = vsel %vm491, %v399, 0.0
    %v622 = vadd.f32 %v620, %v621
    %v623 = vsel %vm491, %v402, 0.0
    %v624 = vadd.f32 %v622, %v623
    %v625 = vsel %vm491, %v405, 0.0
    %v626 = vadd.f32 %v624, %v625
    %v627 = vsel %vm491, %v408, 0.0
    %v628 = vadd.f32 %v626, %v627
    %v629 = vsel %vm491, %v411, 0.0
    %v630 = vadd.f32 %v628, %v629
    %v631 = vsel %vm491, %v414, 0.0
    %v632 = vadd.f32 %v630, %v631
    %v633 = vsel %vm491, %v417, 0.0
    %v634 = vadd.f32 %v632, %v633
    %v635 = vsel %vm491, %v420, 0.0
    %v636 = vadd.f32 %v634, %v635
    %v637 = vsel %vm491, %v423, 0.0
    %v638 = vadd.f32 %v636, %v637
    %v639 = vsel %vm491, %v426, 0.0
    %v640 = vadd.f32 %v638, %v639
    %v641 = vsel %vm491, %v429, 0.0
    %v642 = vadd.f32 %v640, %v641
    %v643 = vsel %vm491, %v432, 0.0
    %v644 = vadd.f32 %v642, %v643
    %v645 = vsel %vm491, %v435, 0.0
    %v646 = vadd.f32 %v644, %v645
    %v647 = vsel %vm491, %v438, 0.0
    %v648 = vadd.f32 %v646, %v647
    %v649 = vsel %vm491, %v441, 0.0
    %v650 = vadd.f32 %v648, %v649
    %v651 = vsel %vm491, %v444, 0.0
    %v652 = vadd.f32 %v650, %v651
    %v653 = vsel %vm491, %v447, 0.0
    %v654 = vadd.f32 %v652, %v653
    %v655 = vsel %vm491, %v450, 0.0
    %v656 = vadd.f32 %v654, %v655
    %v657 = vsel %vm491, %v453, 0.0
    %v658 = vadd.f32 %v656, %v657
    %v659 = vsel %vm491, %v456, 0.0
    %v660 = vadd.f32 %v658, %v659
    %v661 = vsel %vm491, %v459, 0.0
    %v662 = vadd.f32 %v660, %v661
    %v663 = vsel %vm491, %v462, 0.0
    %v664 = vadd.f32 %v662, %v663
    %v665 = vsel %vm491, %v465, 0.0
    %v666 = vadd.f32 %v664, %v665
    %v667 = vsel %vm491, %v468, 0.0
    %v668 = vadd.f32 %v666, %v667
    %v669 = vsel %vm491, %v471, 0.0
    %v670 = vadd.f32 %v668, %v669
    %v671 = vsel %vm491, %v474, 0.0
    %v672 = vadd.f32 %v670, %v671
    %v673 = vsel %vm491, %v477, 0.0
    %v674 = vadd.f32 %v672, %v673
    %v675 = vsel %vm491, %v480, 0.0
    %v676 = vadd.f32 %v674, %v675
    %v677 = vsel %vm491, %v483, 0.0
    %v678 = vadd.f32 %v676, %v677
    %v679 = vsel %vm491, %v486, 0.0
    %v680 = vadd.f32 %v678, %v679
    %v681 = vsel %vm491, %v489, 0.0
    %v682 = vadd.f32 %v680, %v681
    %v683 = vrot.slane %v682, 4
    %v684 = vadd.f32 %v682, %v683
    %v685 = vrot.slane %v684, 2
    %v686 = vadd.f32 %v684, %v685
    %v687 = vrot.slane %v686, 1
    %v688 = vadd.f32 %v686, %v687
    %v689 = vmul.f32 %v300, %v300
    %v690 = vmul.f32 %v303, %v303
    %v691 = vmul.f32 %v306, %v306
    %v692 = vmul.f32 %v309, %v309
    %v693 = vmul.f32 %v312, %v312
    %v694 = vmul.f32 %v315, %v315
    %v695 = vmul.f32 %v318, %v318
    %v696 = vmul.f32 %v321, %v321
    %v697 = vmul.f32 %v324, %v324
    %v698 = vmul.f32 %v327, %v327
    %v699 = vmul.f32 %v330, %v330
    %v700 = vmul.f32 %v333, %v333
    %v701 = vmul.f32 %v336, %v336
    %v702 = vmul.f32 %v339, %v339
    %v703 = vmul.f32 %v342, %v342
    %v704 = vmul.f32 %v345, %v345
    %v705 = vmul.f32 %v348, %v348
    %v706 = vmul.f32 %v351, %v351
    %v707 = vmul.f32 %v354, %v354
    %v708 = vmul.f32 %v357, %v357
    %v709 = vmul.f32 %v360, %v360
    %v710 = vmul.f32 %v363, %v363
    %v711 = vmul.f32 %v366, %v366
    %v712 = vmul.f32 %v369, %v369
    %v713 = vmul.f32 %v372, %v372
    %v714 = vmul.f32 %v375, %v375
    %v715 = vmul.f32 %v378, %v378
    %v716 = vmul.f32 %v381, %v381
    %v717 = vmul.f32 %v384, %v384
    %v718 = vmul.f32 %v387, %v387
    %v719 = vmul.f32 %v390, %v390
    %v720 = vmul.f32 %v393, %v393
    %v721 = vmul.f32 %v396, %v396
    %v722 = vmul.f32 %v399, %v399
    %v723 = vmul.f32 %v402, %v402
    %v724 = vmul.f32 %v405, %v405
    %v725 = vmul.f32 %v408, %v408
    %v726 = vmul.f32 %v411, %v411
    %v727 = vmul.f32 %v414, %v414
    %v728 = vmul.f32 %v417, %v417
    %v729 = vmul.f32 %v420, %v420
    %v730 = vmul.f32 %v423, %v423
    %v731 = vmul.f32 %v426, %v426
    %v732 = vmul.f32 %v429, %v429
    %v733 = vmul.f32 %v432, %v432
    %v734 = vmul.f32 %v435, %v435
    %v735 = vmul.f32 %v438, %v438
    %v736 = vmul.f32 %v441, %v441
    %v737 = vmul.f32 %v444, %v444
    %v738 = vmul.f32 %v447, %v447
    %v739 = vmul.f32 %v450, %v450
    %v740 = vmul.f32 %v453, %v453
    %v741 = vmul.f32 %v456, %v456
    %v742 = vmul.f32 %v459, %v459
    %v743 = vmul.f32 %v462, %v462
    %v744 = vmul.f32 %v465, %v465
    %v745 = vmul.f32 %v468, %v468
    %v746 = vmul.f32 %v471, %v471
    %v747 = vmul.f32 %v474, %v474
    %v748 = vmul.f32 %v477, %v477
    %v749 = vmul.f32 %v480, %v480
    %v750 = vmul.f32 %v483, %v483
    %v751 = vmul.f32 %v486, %v486
    %v752 = vmul.f32 %v489, %v489
    %v753 = vsel %vm491, %v689, 0.0
    %v754 = vsel %vm491, %v690, 0.0
    %v755 = vadd.f32 %v753, %v754
    %v756 = vsel %vm491, %v691, 0.0
    %v757 = vadd.f32 %v755, %v756
    %v758 = vsel %vm491, %v692, 0.0
    %v759 = vadd.f32 %v757, %v758
    %v760 = vsel %vm491, %v693, 0.0
    %v761 = vadd.f32 %v759, %v760
    %v762 = vsel %vm491, %v694, 0.0
    %v763 = vadd.f32 %v761, %v762
    %v764 = vsel %vm491, %v695, 0.0
    %v765 = vadd.f32 %v763, %v764
    %v766 = vsel %vm491, %v696, 0.0
    %v767 = vadd.f32 %v765, %v766
    %v768 = vsel %vm491, %v697, 0.0
    %v769 = vadd.f32 %v767, %v768
    %v770 = vsel %vm491, %v698, 0.0
    %v771 = vadd.f32 %v769, %v770
    %v772 = vsel %vm491, %v699, 0.0
    %v773 = vadd.f32 %v771, %v772
    %v774 = vsel %vm491, %v700, 0.0
    %v775 = vadd.f32 %v773, %v774
    %v776 = vsel %vm491, %v701, 0.0
    %v777 = vadd.f32 %v775, %v776
    %v778 = vsel %vm491, %v702, 0.0
    %v779 = vadd.f32 %v777, %v778
    %v780 = vsel %vm491, %v703, 0.0
    %v781 = vadd.f32 %v779, %v780
    %v782 = vsel %vm491, %v704, 0.0
    %v783 = vadd.f32 %v781, %v782
    %v784 = vsel %vm491, %v705, 0.0
    %v785 = vadd.f32 %v783, %v784
    %v786 = vsel %vm491, %v706, 0.0
    %v787 = vadd.f32 %v785, %v786
    %v788 = vsel %vm491, %v707, 0.0
    %v789 = vadd.f32 %v787, %v788
    %v790 = vsel %vm491, %v708, 0.0
    %v791 = vadd.f32 %v789, %v790
    %v792 = vsel %vm491, %v709, 0.0
    %v793 = vadd.f32 %v791, %v792
    %v794 = vsel %vm491, %v710, 0.0
    %v795 = vadd.f32 %v793, %v794
    %v796 = vsel %vm491, %v711, 0.0
    %v797 = vadd.f32 %v795, %v796
    %v798 = vsel %vm491, %v712, 0.0
    %v799 = vadd.f32 %v797, %v798
    %v800 = vsel %vm491, %v713, 0.0
    %v801 = vadd.f32 %v799, %v800
    %v802 = vsel %vm491, %v714, 0.0
    %v803 = vadd.f32 %v801, %v802
    %v804 = vsel %vm491, %v715, 0.0
    %v805 = vadd.f32 %v803, %v804
    %v806 = vsel %vm491, %v716, 0.0
    %v807 = vadd.f32 %v805, %v806
    %v808 = vsel %vm491, %v717, 0.0
    %v809 = vadd.f32 %v807, %v808
    %v810 = vsel %vm491, %v718, 0.0
    %v811 = vadd.f32 %v809, %v810
    %v812 = vsel %vm491, %v719, 0.0
    %v813 = vadd.f32 %v811, %v812
    %v814 = vsel %vm491, %v720, 0.0
    %v815 = vadd.f32 %v813, %v814
    %v816 = vsel %vm491, %v721, 0.0
    %v817 = vadd.f32 %v815, %v816
    %v818 = vsel %vm491, %v722, 0.0
    %v819 = vadd.f32 %v817, %v818
    %v820 = vsel %vm491, %v723, 0.0
    %v821 = vadd.f32 %v819, %v820
    %v822 = vsel %vm491, %v724, 0.0
    %v823 = vadd.f32 %v821, %v822
    %v824 = vsel %vm491, %v725, 0.0
    %v825 = vadd.f32 %v823, %v824
    %v826 = vsel %vm491, %v726, 0.0
    %v827 = vadd.f32 %v825, %v826
    %v828 = vsel %vm491, %v727, 0.0
    %v829 = vadd.f32 %v827, %v828
    %v830 = vsel %vm491, %v728, 0.0
    %v831 = vadd.f32 %v829, %v830
    %v832 = vsel %vm491, %v729, 0.0
    %v833 = vadd.f32 %v831, %v832
    %v834 = vsel %vm491, %v730, 0.0
    %v835 = vadd.f32 %v833, %v834
    %v836 = vsel %vm491, %v731, 0.0
    %v837 = vadd.f32 %v835, %v836
    %v838 = vsel %vm491, %v732, 0.0
    %v839 = vadd.f32 %v837, %v838
    %v840 = vsel %vm491, %v733, 0.0
    %v841 = vadd.f32 %v839, %v840
    %v842 = vsel %vm491, %v734, 0.0
    %v843 = vadd.f32 %v841, %v842
    %v844 = vsel %vm491, %v735, 0.0
    %v845 = vadd.f32 %v843, %v844
    %v846 = vsel %vm491, %v736, 0.0
    %v847 = vadd.f32 %v845, %v846
    %v848 = vsel %vm491, %v737, 0.0
    %v849 = vadd.f32 %v847, %v848
    %v850 = vsel %vm491, %v738, 0.0
    %v851 = vadd.f32 %v849, %v850
    %v852 = vsel %vm491, %v739, 0.0
    %v853 = vadd.f32 %v851, %v852
    %v854 = vsel %vm491, %v740, 0.0
    %v855 = vadd.f32 %v853, %v854
    %v856 = vsel %vm491, %v741, 0.0
    %v857 = vadd.f32 %v855, %v856
    %v858 = vsel %vm491, %v742, 0.0
    %v859 = vadd.f32 %v857, %v858
    %v860 = vsel %vm491, %v743, 0.0
    %v861 = vadd.f32 %v859, %v860
    %v862 = vsel %vm491, %v744, 0.0
    %v863 = vadd.f32 %v861, %v862
    %v864 = vsel %vm491, %v745, 0.0
    %v865 = vadd.f32 %v863, %v864
    %v866 = vsel %vm491, %v746, 0.0
    %v867 = vadd.f32 %v865, %v866
    %v868 = vsel %vm491, %v747, 0.0
    %v869 = vadd.f32 %v867, %v868
    %v870 = vsel %vm491, %v748, 0.0
    %v871 = vadd.f32 %v869, %v870
    %v872 = vsel %vm491, %v749, 0.0
    %v873 = vadd.f32 %v871, %v872
    %v874 = vsel %vm491, %v750, 0.0
    %v875 = vadd.f32 %v873, %v874
    %v876 = vsel %vm491, %v751, 0.0
    %v877 = vadd.f32 %v875, %v876
    %v878 = vsel %vm491, %v752, 0.0
    %v879 = vadd.f32 %v877, %v878
    %v880 = vrot.slane %v879, 4
    %v881 = vadd.f32 %v879, %v880
    %v882 = vrot.slane %v881, 2
    %v883 = vadd.f32 %v881, %v882
    %v884 = vrot.slane %v883, 1
    %v885 = vadd.f32 %v883, %v884
    %vm886 = vcmask 1040384
    %v887 = vsel %vm886, %v688, %v885
    %vm888 = vcmask 58368
    %889 = vst.msk [vmem:[#allocation2] sm:$0x3] %vm888, %v887
    %v890 = vld [vmem:[%s2] sm:$0xf]
    %v892 = vsel %vm278, %v890, 0
    %894 = vmatpush.msra.mxu0 0.0
    %895 = vmatpush.msra.mxu0 0.0
    %896 = vmatpush.msra.mxu0 0.0
    %897 = vmatpush.msra.mxu0 0.0
    %898 = vmatpush.msra.mxu0 0.0
    %899 = vmatpush.msra.mxu0 0.0
    %900 = vmatpush.msra.mxu0 0.0
    %901 = vmatpush.msra.mxu0 0.0
    %902 = vmatpush.msra.mxu0 0.0
    %903 = vmatpush.msra.mxu0 0.0
    %904 = vmatpush.msra.mxu0 0.0
    %905 = vmatpush.msra.mxu0 0.0
    %906 = vmatpush.msra.mxu0 0.0
    %907 = vmatpush.msra.mxu0 0.0
    %908 = vmatpush.msra.mxu0 0.0
    %909 = vmatpush.msra.mxu0 %v892
    %910 = vmatmul.f32.gmra.mxu0 %v87
    %v911 = vpop.f32.mrf.mxu0
    %v912 = vadd.f32 0.0, %v911
    %913 = vmatmul.f32.gmra.mxu0 %v90
    %v914 = vpop.f32.mrf.mxu0
    %v915 = vadd.f32 0.0, %v914
    %916 = vmatmul.f32.gmra.mxu0 %v93
    %v917 = vpop.f32.mrf.mxu0
    %v918 = vadd.f32 0.0, %v917
    %919 = vmatmul.f32.gmra.mxu0 %v96
    %v920 = vpop.f32.mrf.mxu0
    %v921 = vadd.f32 0.0, %v920
    %922 = vmatmul.f32.gmra.mxu0 %v99
    %v923 = vpop.f32.mrf.mxu0
    %v924 = vadd.f32 0.0, %v923
    %925 = vmatmul.f32.gmra.mxu0 %v102
    %v926 = vpop.f32.mrf.mxu0
    %v927 = vadd.f32 0.0, %v926
    %928 = vmatmul.f32.gmra.mxu0 %v105
    %v929 = vpop.f32.mrf.mxu0
    %v930 = vadd.f32 0.0, %v929
    %931 = vmatmul.f32.gmra.mxu0 %v108
    %v932 = vpop.f32.mrf.mxu0
    %v933 = vadd.f32 0.0, %v932
    %934 = vmatmul.f32.gmra.mxu0 %v111
    %v935 = vpop.f32.mrf.mxu0
    %v936 = vadd.f32 0.0, %v935
    %937 = vmatmul.f32.gmra.mxu0 %v114
    %v938 = vpop.f32.mrf.mxu0
    %v939 = vadd.f32 0.0, %v938
    %940 = vmatmul.f32.gmra.mxu0 %v117
    %v941 = vpop.f32.mrf.mxu0
    %v942 = vadd.f32 0.0, %v941
    %943 = vmatmul.f32.gmra.mxu0 %v120
    %v944 = vpop.f32.mrf.mxu0
    %v945 = vadd.f32 0.0, %v944
    %946 = vmatmul.f32.gmra.mxu0 %v123
    %v947 = vpop.f32.mrf.mxu0
    %v948 = vadd.f32 0.0, %v947
    %949 = vmatmul.f32.gmra.mxu0 %v126
    %v950 = vpop.f32.mrf.mxu0
    %v951 = vadd.f32 0.0, %v950
    %952 = vmatmul.f32.gmra.mxu0 %v129
    %v953 = vpop.f32.mrf.mxu0
    %v954 = vadd.f32 0.0, %v953
    %955 = vmatmul.f32.gmra.mxu0 %v132
    %v956 = vpop.f32.mrf.mxu0
    %v957 = vadd.f32 0.0, %v956
    %958 = vmatmul.f32.gmra.mxu0 %v135
    %v959 = vpop.f32.mrf.mxu0
    %v960 = vadd.f32 0.0, %v959
    %961 = vmatmul.f32.gmra.mxu0 %v138
    %v962 = vpop.f32.mrf.mxu0
    %v963 = vadd.f32 0.0, %v962
    %964 = vmatmul.f32.gmra.mxu0 %v141
    %v965 = vpop.f32.mrf.mxu0
    %v966 = vadd.f32 0.0, %v965
    %967 = vmatmul.f32.gmra.mxu0 %v144
    %v968 = vpop.f32.mrf.mxu0
    %v969 = vadd.f32 0.0, %v968
    %970 = vmatmul.f32.gmra.mxu0 %v147
    %v971 = vpop.f32.mrf.mxu0
    %v972 = vadd.f32 0.0, %v971
    %973 = vmatmul.f32.gmra.mxu0 %v150
    %v974 = vpop.f32.mrf.mxu0
    %v975 = vadd.f32 0.0, %v974
    %976 = vmatmul.f32.gmra.mxu0 %v153
    %v977 = vpop.f32.mrf.mxu0
    %v978 = vadd.f32 0.0, %v977
    %979 = vmatmul.f32.gmra.mxu0 %v156
    %v980 = vpop.f32.mrf.mxu0
    %v981 = vadd.f32 0.0, %v980
    %982 = vmatmul.f32.gmra.mxu0 %v159
    %v983 = vpop.f32.mrf.mxu0
    %v984 = vadd.f32 0.0, %v983
    %985 = vmatmul.f32.gmra.mxu0 %v162
    %v986 = vpop.f32.mrf.mxu0
    %v987 = vadd.f32 0.0, %v986
    %988 = vmatmul.f32.gmra.mxu0 %v165
    %v989 = vpop.f32.mrf.mxu0
    %v990 = vadd.f32 0.0, %v989
    %991 = vmatmul.f32.gmra.mxu0 %v168
    %v992 = vpop.f32.mrf.mxu0
    %v993 = vadd.f32 0.0, %v992
    %994 = vmatmul.f32.gmra.mxu0 %v171
    %v995 = vpop.f32.mrf.mxu0
    %v996 = vadd.f32 0.0, %v995
    %997 = vmatmul.f32.gmra.mxu0 %v174
    %v998 = vpop.f32.mrf.mxu0
    %v999 = vadd.f32 0.0, %v998
    %1000 = vmatmul.f32.gmra.mxu0 %v177
    %v1001 = vpop.f32.mrf.mxu0
    %v1002 = vadd.f32 0.0, %v1001
    %1003 = vmatmul.f32.gmra.mxu0 %v180
    %v1004 = vpop.f32.mrf.mxu0
    %v1005 = vadd.f32 0.0, %v1004
    %1006 = vmatmul.f32.gmra.mxu0 %v183
    %v1007 = vpop.f32.mrf.mxu0
    %v1008 = vadd.f32 0.0, %v1007
    %1009 = vmatmul.f32.gmra.mxu0 %v186
    %v1010 = vpop.f32.mrf.mxu0
    %v1011 = vadd.f32 0.0, %v1010
    %1012 = vmatmul.f32.gmra.mxu0 %v189
    %v1013 = vpop.f32.mrf.mxu0
    %v1014 = vadd.f32 0.0, %v1013
    %1015 = vmatmul.f32.gmra.mxu0 %v192
    %v1016 = vpop.f32.mrf.mxu0
    %v1017 = vadd.f32 0.0, %v1016
    %1018 = vmatmul.f32.gmra.mxu0 %v195
    %v1019 = vpop.f32.mrf.mxu0
    %v1020 = vadd.f32 0.0, %v1019
    %1021 = vmatmul.f32.gmra.mxu0 %v198
    %v1022 = vpop.f32.mrf.mxu0
    %v1023 = vadd.f32 0.0, %v1022
    %1024 = vmatmul.f32.gmra.mxu0 %v201
    %v1025 = vpop.f32.mrf.mxu0
    %v1026 = vadd.f32 0.0, %v1025
    %1027 = vmatmul.f32.gmra.mxu0 %v204
    %v1028 = vpop.f32.mrf.mxu0
    %v1029 = vadd.f32 0.0, %v1028
    %1030 = vmatmul.f32.gmra.mxu0 %v207
    %v1031 = vpop.f32.mrf.mxu0
    %v1032 = vadd.f32 0.0, %v1031
    %1033 = vmatmul.f32.gmra.mxu0 %v210
    %v1034 = vpop.f32.mrf.mxu0
    %v1035 = vadd.f32 0.0, %v1034
    %1036 = vmatmul.f32.gmra.mxu0 %v213
    %v1037 = vpop.f32.mrf.mxu0
    %v1038 = vadd.f32 0.0, %v1037
    %1039 = vmatmul.f32.gmra.mxu0 %v216
    %v1040 = vpop.f32.mrf.mxu0
    %v1041 = vadd.f32 0.0, %v1040
    %1042 = vmatmul.f32.gmra.mxu0 %v219
    %v1043 = vpop.f32.mrf.mxu0
    %v1044 = vadd.f32 0.0, %v1043
    %1045 = vmatmul.f32.gmra.mxu0 %v222
    %v1046 = vpop.f32.mrf.mxu0
    %v1047 = vadd.f32 0.0, %v1046
    %1048 = vmatmul.f32.gmra.mxu0 %v225
    %v1049 = vpop.f32.mrf.mxu0
    %v1050 = vadd.f32 0.0, %v1049
    %1051 = vmatmul.f32.gmra.mxu0 %v228
    %v1052 = vpop.f32.mrf.mxu0
    %v1053 = vadd.f32 0.0, %v1052
    %1054 = vmatmul.f32.gmra.mxu0 %v231
    %v1055 = vpop.f32.mrf.mxu0
    %v1056 = vadd.f32 0.0, %v1055
    %1057 = vmatmul.f32.gmra.mxu0 %v234
    %v1058 = vpop.f32.mrf.mxu0
    %v1059 = vadd.f32 0.0, %v1058
    %1060 = vmatmul.f32.gmra.mxu0 %v237
    %v1061 = vpop.f32.mrf.mxu0
    %v1062 = vadd.f32 0.0, %v1061
    %1063 = vmatmul.f32.gmra.mxu0 %v240
    %v1064 = vpop.f32.mrf.mxu0
    %v1065 = vadd.f32 0.0, %v1064
    %1066 = vmatmul.f32.gmra.mxu0 %v243
    %v1067 = vpop.f32.mrf.mxu0
    %v1068 = vadd.f32 0.0, %v1067
    %1069 = vmatmul.f32.gmra.mxu0 %v246
    %v1070 = vpop.f32.mrf.mxu0
    %v1071 = vadd.f32 0.0, %v1070
    %1072 = vmatmul.f32.gmra.mxu0 %v249
    %v1073 = vpop.f32.mrf.mxu0
    %v1074 = vadd.f32 0.0, %v1073
    %1075 = vmatmul.f32.gmra.mxu0 %v252
    %v1076 = vpop.f32.mrf.mxu0
    %v1077 = vadd.f32 0.0, %v1076
    %1078 = vmatmul.f32.gmra.mxu0 %v255
    %v1079 = vpop.f32.mrf.mxu0
    %v1080 = vadd.f32 0.0, %v1079
    %1081 = vmatmul.f32.gmra.mxu0 %v258
    %v1082 = vpop.f32.mrf.mxu0
    %v1083 = vadd.f32 0.0, %v1082
    %1084 = vmatmul.f32.gmra.mxu0 %v261
    %v1085 = vpop.f32.mrf.mxu0
    %v1086 = vadd.f32 0.0, %v1085
    %1087 = vmatmul.f32.gmra.mxu0 %v264
    %v1088 = vpop.f32.mrf.mxu0
    %v1089 = vadd.f32 0.0, %v1088
    %1090 = vmatmul.f32.gmra.mxu0 %v267
    %v1091 = vpop.f32.mrf.mxu0
    %v1092 = vadd.f32 0.0, %v1091
    %1093 = vmatmul.f32.gmra.mxu0 %v270
    %v1094 = vpop.f32.mrf.mxu0
    %v1095 = vadd.f32 0.0, %v1094
    %1096 = vmatmul.f32.gmra.mxu0 %v273
    %v1097 = vpop.f32.mrf.mxu0
    %v1098 = vadd.f32 0.0, %v1097
    %1099 = vmatmul.f32.gmra.mxu0 %v276
    %v1100 = vpop.f32.mrf.mxu0
    %v1101 = vadd.f32 0.0, %v1100
    %1102 = vdwg.mxu0
    %vm1103 = vcmask 261120
    %1104 = vst.msk [vmem:[%s4] sm:$0xff] %vm1103, %v912
    %1105 = vst.msk [vmem:[%s4 + $0x8] sm:$0xff] %vm1103, %v915
    %1106 = vst.msk [vmem:[%s4 + $0x10] sm:$0xff] %vm1103, %v918
    %1107 = vst.msk [vmem:[%s4 + $0x18] sm:$0xff] %vm1103, %v921
    %1108 = vst.msk [vmem:[%s4 + $0x20] sm:$0xff] %vm1103, %v924
    %1109 = vst.msk [vmem:[%s4 + $0x28] sm:$0xff] %vm1103, %v927
    %1110 = vst.msk [vmem:[%s4 + $0x30] sm:$0xff] %vm1103, %v930
    %1111 = vst.msk [vmem:[%s4 + $0x38] sm:$0xff] %vm1103, %v933
    %1112 = vst.msk [vmem:[%s4 + $0x40] sm:$0xff] %vm1103, %v936
    %1113 = vst.msk [vmem:[%s4 + $0x48] sm:$0xff] %vm1103, %v939
    %1114 = vst.msk [vmem:[%s4 + $0x50] sm:$0xff] %vm1103, %v942
    %1115 = vst.msk [vmem:[%s4 + $0x58] sm:$0xff] %vm1103, %v945
    %1116 = vst.msk [vmem:[%s4 + $0x60] sm:$0xff] %vm1103, %v948
    %1117 = vst.msk [vmem:[%s4 + $0x68] sm:$0xff] %vm1103, %v951
    %1118 = vst.msk [vmem:[%s4 + $0x70] sm:$0xff] %vm1103, %v954
    %1119 = vst.msk [vmem:[%s4 + $0x78] sm:$0xff] %vm1103, %v957
    %1120 = vst.msk [vmem:[%s4 + $0x80] sm:$0xff] %vm1103, %v960
    %1121 = vst.msk [vmem:[%s4 + $0x88] sm:$0xff] %vm1103, %v963
    %1122 = vst.msk [vmem:[%s4 + $0x90] sm:$0xff] %vm1103, %v966
    %1123 = vst.msk [vmem:[%s4 + $0x98] sm:$0xff] %vm1103, %v969
    %1124 = vst.msk [vmem:[%s4 + $0xa0] sm:$0xff] %vm1103, %v972
    %1125 = vst.msk [vmem:[%s4 + $0xa8] sm:$0xff] %vm1103, %v975
    %1126 = vst.msk [vmem:[%s4 + $0xb0] sm:$0xff] %vm1103, %v978
    %1127 = vst.msk [vmem:[%s4 + $0xb8] sm:$0xff] %vm1103, %v981
    %1128 = vst.msk [vmem:[%s4 + $0xc0] sm:$0xff] %vm1103, %v984
    %1129 = vst.msk [vmem:[%s4 + $0xc8] sm:$0xff] %vm1103, %v987
    %1130 = vst.msk [vmem:[%s4 + $0xd0] sm:$0xff] %vm1103, %v990
    %1131 = vst.msk [vmem:[%s4 + $0xd8] sm:$0xff] %vm1103, %v993
    %1132 = vst.msk [vmem:[%s4 + $0xe0] sm:$0xff] %vm1103, %v996
    %1133 = vst.msk [vmem:[%s4 + $0xe8] sm:$0xff] %vm1103, %v999
    %1134 = vst.msk [vmem:[%s4 + $0xf0] sm:$0xff] %vm1103, %v1002
    %1135 = vst.msk [vmem:[%s4 + $0xf8] sm:$0xff] %vm1103, %v1005
    %1136 = vst.msk [vmem:[%s4 + $0x100] sm:$0xff] %vm1103, %v1008
    %1137 = vst.msk [vmem:[%s4 + $0x108] sm:$0xff] %vm1103, %v1011
    %1138 = vst.msk [vmem:[%s4 + $0x110] sm:$0xff] %vm1103, %v1014
    %1139 = vst.msk [vmem:[%s4 + $0x118] sm:$0xff] %vm1103, %v1017
    %1140 = vst.msk [vmem:[%s4 + $0x120] sm:$0xff] %vm1103, %v1020
    %1141 = vst.msk [vmem:[%s4 + $0x128] sm:$0xff] %vm1103, %v1023
    %1142 = vst.msk [vmem:[%s4 + $0x130] sm:$0xff] %vm1103, %v1026
    %1143 = vst.msk [vmem:[%s4 + $0x138] sm:$0xff] %vm1103, %v1029
    %1144 = vst.msk [vmem:[%s4 + $0x140] sm:$0xff] %vm1103, %v1032
    %1145 = vst.msk [vmem:[%s4 + $0x148] sm:$0xff] %vm1103, %v1035
    %1146 = vst.msk [vmem:[%s4 + $0x150] sm:$0xff] %vm1103, %v1038
    %1147 = vst.msk [vmem:[%s4 + $0x158] sm:$0xff] %vm1103, %v1041
    %1148 = vst.msk [vmem:[%s4 + $0x160] sm:$0xff] %vm1103, %v1044
    %1149 = vst.msk [vmem:[%s4 + $0x168] sm:$0xff] %vm1103, %v1047
    %1150 = vst.msk [vmem:[%s4 + $0x170] sm:$0xff] %vm1103, %v1050
    %1151 = vst.msk [vmem:[%s4 + $0x178] sm:$0xff] %vm1103, %v1053
    %1152 = vst.msk [vmem:[%s4 + $0x180] sm:$0xff] %vm1103, %v1056
    %1153 = vst.msk [vmem:[%s4 + $0x188] sm:$0xff] %vm1103, %v1059
    %1154 = vst.msk [vmem:[%s4 + $0x190] sm:$0xff] %vm1103, %v1062
    %1155 = vst.msk [vmem:[%s4 + $0x198] sm:$0xff] %vm1103, %v1065
    %1156 = vst.msk [vmem:[%s4 + $0x1a0] sm:$0xff] %vm1103, %v1068
    %1157 = vst.msk [vmem:[%s4 + $0x1a8] sm:$0xff] %vm1103, %v1071
    %1158 = vst.msk [vmem:[%s4 + $0x1b0] sm:$0xff] %vm1103, %v1074
    %1159 = vst.msk [vmem:[%s4 + $0x1b8] sm:$0xff] %vm1103, %v1077
    %1160 = vst.msk [vmem:[%s4 + $0x1c0] sm:$0xff] %vm1103, %v1080
    %1161 = vst.msk [vmem:[%s4 + $0x1c8] sm:$0xff] %vm1103, %v1083
    %1162 = vst.msk [vmem:[%s4 + $0x1d0] sm:$0xff] %vm1103, %v1086
    %1163 = vst.msk [vmem:[%s4 + $0x1d8] sm:$0xff] %vm1103, %v1089
    %1164 = vst.msk [vmem:[%s4 + $0x1e0] sm:$0xff] %vm1103, %v1092
    %1165 = vst.msk [vmem:[%s4 + $0x1e8] sm:$0xff] %vm1103, %v1095
    %1166 = vst.msk [vmem:[%s4 + $0x1f0] sm:$0xff] %vm1103, %v1098
    %1167 = vst.msk [vmem:[%s4 + $0x1f8] sm:$0xff] %vm1103, %v1101
    %v1168 = vsel %vm1103, %v912, 0.0
    %v1169 = vsel %vm1103, %v915, 0.0
    %v1170 = vadd.f32 %v1168, %v1169
    %v1171 = vsel %vm1103, %v918, 0.0
    %v1172 = vadd.f32 %v1170, %v1171
    %v1173 = vsel %vm1103, %v921, 0.0
    %v1174 = vadd.f32 %v1172, %v1173
    %v1175 = vsel %vm1103, %v924, 0.0
    %v1176 = vadd.f32 %v1174, %v1175
    %v1177 = vsel %vm1103, %v927, 0.0
    %v1178 = vadd.f32 %v1176, %v1177
    %v1179 = vsel %vm1103, %v930, 0.0
    %v1180 = vadd.f32 %v1178, %v1179
    %v1181 = vsel %vm1103, %v933, 0.0
    %v1182 = vadd.f32 %v1180, %v1181
    %v1183 = vsel %vm1103, %v936, 0.0
    %v1184 = vadd.f32 %v1182, %v1183
    %v1185 = vsel %vm1103, %v939, 0.0
    %v1186 = vadd.f32 %v1184, %v1185
    %v1187 = vsel %vm1103, %v942, 0.0
    %v1188 = vadd.f32 %v1186, %v1187
    %v1189 = vsel %vm1103, %v945, 0.0
    %v1190 = vadd.f32 %v1188, %v1189
    %v1191 = vsel %vm1103, %v948, 0.0
    %v1192 = vadd.f32 %v1190, %v1191
    %v1193 = vsel %vm1103, %v951, 0.0
    %v1194 = vadd.f32 %v1192, %v1193
    %v1195 = vsel %vm1103, %v954, 0.0
    %v1196 = vadd.f32 %v1194, %v1195
    %v1197 = vsel %vm1103, %v957, 0.0
    %v1198 = vadd.f32 %v1196, %v1197
    %v1199 = vsel %vm1103, %v960, 0.0
    %v1200 = vadd.f32 %v1198, %v1199
    %v1201 = vsel %vm1103, %v963, 0.0
    %v1202 = vadd.f32 %v1200, %v1201
    %v1203 = vsel %vm1103, %v966, 0.0
    %v1204 = vadd.f32 %v1202, %v1203
    %v1205 = vsel %vm1103, %v969, 0.0
    %v1206 = vadd.f32 %v1204, %v1205
    %v1207 = vsel %vm1103, %v972, 0.0
    %v1208 = vadd.f32 %v1206, %v1207
    %v1209 = vsel %vm1103, %v975, 0.0
    %v1210 = vadd.f32 %v1208, %v1209
    %v1211 = vsel %vm1103, %v978, 0.0
    %v1212 = vadd.f32 %v1210, %v1211
    %v1213 = vsel %vm1103, %v981, 0.0
    %v1214 = vadd.f32 %v1212, %v1213
    %v1215 = vsel %vm1103, %v984, 0.0
    %v1216 = vadd.f32 %v1214, %v1215
    %v1217 = vsel %vm1103, %v987, 0.0
    %v1218 = vadd.f32 %v1216, %v1217
    %v1219 = vsel %vm1103, %v990, 0.0
    %v1220 = vadd.f32 %v1218, %v1219
    %v1221 = vsel %vm1103, %v993, 0.0
    %v1222 = vadd.f32 %v1220, %v1221
    %v1223 = vsel %vm1103, %v996, 0.0
    %v1224 = vadd.f32 %v1222, %v1223
    %v1225 = vsel %vm1103, %v999, 0.0
    %v1226 = vadd.f32 %v1224, %v1225
    %v1227 = vsel %vm1103, %v1002, 0.0
    %v1228 = vadd.f32 %v1226, %v1227
    %v1229 = vsel %vm1103, %v1005, 0.0
    %v1230 = vadd.f32 %v1228, %v1229
    %v1231 = vsel %vm1103, %v1008, 0.0
    %v1232 = vadd.f32 %v1230, %v1231
    %v1233 = vsel %vm1103, %v1011, 0.0
    %v1234 = vadd.f32 %v1232, %v1233
    %v1235 = vsel %vm1103, %v1014, 0.0
    %v1236 = vadd.f32 %v1234, %v1235
    %v1237 = vsel %vm1103, %v1017, 0.0
    %v1238 = vadd.f32 %v1236, %v1237
    %v1239 = vsel %vm1103, %v1020, 0.0
    %v1240 = vadd.f32 %v1238, %v1239
    %v1241 = vsel %vm1103, %v1023, 0.0
    %v1242 = vadd.f32 %v1240, %v1241
    %v1243 = vsel %vm1103, %v1026, 0.0
    %v1244 = vadd.f32 %v1242, %v1243
    %v1245 = vsel %vm1103, %v1029, 0.0
    %v1246 = vadd.f32 %v1244, %v1245
    %v1247 = vsel %vm1103, %v1032, 0.0
    %v1248 = vadd.f32 %v1246, %v1247
    %v1249 = vsel %vm1103, %v1035, 0.0
    %v1250 = vadd.f32 %v1248, %v1249
    %v1251 = vsel %vm1103, %v1038, 0.0
    %v1252 = vadd.f32 %v1250, %v1251
    %v1253 = vsel %vm1103, %v1041, 0.0
    %v1254 = vadd.f32 %v1252, %v1253
    %v1255 = vsel %vm1103, %v1044, 0.0
    %v1256 = vadd.f32 %v1254, %v1255
    %v1257 = vsel %vm1103, %v1047, 0.0
    %v1258 = vadd.f32 %v1256, %v1257
    %v1259 = vsel %vm1103, %v1050, 0.0
    %v1260 = vadd.f32 %v1258, %v1259
    %v1261 = vsel %vm1103, %v1053, 0.0
    %v1262 = vadd.f32 %v1260, %v1261
    %v1263 = vsel %vm1103, %v1056, 0.0
    %v1264 = vadd.f32 %v1262, %v1263
    %v1265 = vsel %vm1103, %v1059, 0.0
    %v1266 = vadd.f32 %v1264, %v1265
    %v1267 = vsel %vm1103, %v1062, 0.0
    %v1268 = vadd.f32 %v1266, %v1267
    %v1269 = vsel %vm1103, %v1065, 0.0
    %v1270 = vadd.f32 %v1268, %v1269
    %v1271 = vsel %vm1103, %v1068, 0.0
    %v1272 = vadd.f32 %v1270, %v1271
    %v1273 = vsel %vm1103, %v1071, 0.0
    %v1274 = vadd.f32 %v1272, %v1273
    %v1275 = vsel %vm1103, %v1074, 0.0
    %v1276 = vadd.f32 %v1274, %v1275
    %v1277 = vsel %vm1103, %v1077, 0.0
    %v1278 = vadd.f32 %v1276, %v1277
    %v1279 = vsel %vm1103, %v1080, 0.0
    %v1280 = vadd.f32 %v1278, %v1279
    %v1281 = vsel %vm1103, %v1083, 0.0
    %v1282 = vadd.f32 %v1280, %v1281
    %v1283 = vsel %vm1103, %v1086, 0.0
    %v1284 = vadd.f32 %v1282, %v1283
    %v1285 = vsel %vm1103, %v1089, 0.0
    %v1286 = vadd.f32 %v1284, %v1285
    %v1287 = vsel %vm1103, %v1092, 0.0
    %v1288 = vadd.f32 %v1286, %v1287
    %v1289 = vsel %vm1103, %v1095, 0.0
    %v1290 = vadd.f32 %v1288, %v1289
    %v1291 = vsel %vm1103, %v1098, 0.0
    %v1292 = vadd.f32 %v1290, %v1291
    %v1293 = vsel %vm1103, %v1101, 0.0
    %v1294 = vadd.f32 %v1292, %v1293
    %v1295 = vrot.slane %v1294, 4
    %v1296 = vadd.f32 %v1294, %v1295
    %v1297 = vrot.slane %v1296, 2
    %v1298 = vadd.f32 %v1296, %v1297
    %v1299 = vrot.slane %v1298, 1
    %v1300 = vadd.f32 %v1298, %v1299
    %v1301 = vmul.f32 %v912, %v912
    %v1302 = vmul.f32 %v915, %v915
    %v1303 = vmul.f32 %v918, %v918
    %v1304 = vmul.f32 %v921, %v921
    %v1305 = vmul.f32 %v924, %v924
    %v1306 = vmul.f32 %v927, %v927
    %v1307 = vmul.f32 %v930, %v930
    %v1308 = vmul.f32 %v933, %v933
    %v1309 = vmul.f32 %v936, %v936
    %v1310 = vmul.f32 %v939, %v939
    %v1311 = vmul.f32 %v942, %v942
    %v1312 = vmul.f32 %v945, %v945
    %v1313 = vmul.f32 %v948, %v948
    %v1314 = vmul.f32 %v951, %v951
    %v1315 = vmul.f32 %v954, %v954
    %v1316 = vmul.f32 %v957, %v957
    %v1317 = vmul.f32 %v960, %v960
    %v1318 = vmul.f32 %v963, %v963
    %v1319 = vmul.f32 %v966, %v966
    %v1320 = vmul.f32 %v969, %v969
    %v1321 = vmul.f32 %v972, %v972
    %v1322 = vmul.f32 %v975, %v975
    %v1323 = vmul.f32 %v978, %v978
    %v1324 = vmul.f32 %v981, %v981
    %v1325 = vmul.f32 %v984, %v984
    %v1326 = vmul.f32 %v987, %v987
    %v1327 = vmul.f32 %v990, %v990
    %v1328 = vmul.f32 %v993, %v993
    %v1329 = vmul.f32 %v996, %v996
    %v1330 = vmul.f32 %v999, %v999
    %v1331 = vmul.f32 %v1002, %v1002
    %v1332 = vmul.f32 %v1005, %v1005
    %v1333 = vmul.f32 %v1008, %v1008
    %v1334 = vmul.f32 %v1011, %v1011
    %v1335 = vmul.f32 %v1014, %v1014
    %v1336 = vmul.f32 %v1017, %v1017
    %v1337 = vmul.f32 %v1020, %v1020
    %v1338 = vmul.f32 %v1023, %v1023
    %v1339 = vmul.f32 %v1026, %v1026
    %v1340 = vmul.f32 %v1029, %v1029
    %v1341 = vmul.f32 %v1032, %v1032
    %v1342 = vmul.f32 %v1035, %v1035
    %v1343 = vmul.f32 %v1038, %v1038
    %v1344 = vmul.f32 %v1041, %v1041
    %v1345 = vmul.f32 %v1044, %v1044
    %v1346 = vmul.f32 %v1047, %v1047
    %v1347 = vmul.f32 %v1050, %v1050
    %v1348 = vmul.f32 %v1053, %v1053
    %v1349 = vmul.f32 %v1056, %v1056
    %v1350 = vmul.f32 %v1059, %v1059
    %v1351 = vmul.f32 %v1062, %v1062
    %v1352 = vmul.f32 %v1065, %v1065
    %v1353 = vmul.f32 %v1068, %v1068
    %v1354 = vmul.f32 %v1071, %v1071
    %v1355 = vmul.f32 %v1074, %v1074
    %v1356 = vmul.f32 %v1077, %v1077
    %v1357 = vmul.f32 %v1080, %v1080
    %v1358 = vmul.f32 %v1083, %v1083
    %v1359 = vmul.f32 %v1086, %v1086
    %v1360 = vmul.f32 %v1089, %v1089
    %v1361 = vmul.f32 %v1092, %v1092
    %v1362 = vmul.f32 %v1095, %v1095
    %v1363 = vmul.f32 %v1098, %v1098
    %v1364 = vmul.f32 %v1101, %v1101
    %v1365 = vsel %vm1103, %v1301, 0.0
    %v1366 = vsel %vm1103, %v1302, 0.0
    %v1367 = vadd.f32 %v1365, %v1366
    %v1368 = vsel %vm1103, %v1303, 0.0
    %v1369 = vadd.f32 %v1367, %v1368
    %v1370 = vsel %vm1103, %v1304, 0.0
    %v1371 = vadd.f32 %v1369, %v1370
    %v1372 = vsel %vm1103, %v1305, 0.0
    %v1373 = vadd.f32 %v1371, %v1372
    %v1374 = vsel %vm1103, %v1306, 0.0
    %v1375 = vadd.f32 %v1373, %v1374
    %v1376 = vsel %vm1103, %v1307, 0.0
    %v1377 = vadd.f32 %v1375, %v1376
    %v1378 = vsel %vm1103, %v1308, 0.0
    %v1379 = vadd.f32 %v1377, %v1378
    %v1380 = vsel %vm1103, %v1309, 0.0
    %v1381 = vadd.f32 %v1379, %v1380
    %v1382 = vsel %vm1103, %v1310, 0.0
    %v1383 = vadd.f32 %v1381, %v1382
    %v1384 = vsel %vm1103, %v1311, 0.0
    %v1385 = vadd.f32 %v1383, %v1384
    %v1386 = vsel %vm1103, %v1312, 0.0
    %v1387 = vadd.f32 %v1385, %v1386
    %v1388 = vsel %vm1103, %v1313, 0.0
    %v1389 = vadd.f32 %v1387, %v1388
    %v1390 = vsel %vm1103, %v1314, 0.0
    %v1391 = vadd.f32 %v1389, %v1390
    %v1392 = vsel %vm1103, %v1315, 0.0
    %v1393 = vadd.f32 %v1391, %v1392
    %v1394 = vsel %vm1103, %v1316, 0.0
    %v1395 = vadd.f32 %v1393, %v1394
    %v1396 = vsel %vm1103, %v1317, 0.0
    %v1397 = vadd.f32 %v1395, %v1396
    %v1398 = vsel %vm1103, %v1318, 0.0
    %v1399 = vadd.f32 %v1397, %v1398
    %v1400 = vsel %vm1103, %v1319, 0.0
    %v1401 = vadd.f32 %v1399, %v1400
    %v1402 = vsel %vm1103, %v1320, 0.0
    %v1403 = vadd.f32 %v1401, %v1402
    %v1404 = vsel %vm1103, %v1321, 0.0
    %v1405 = vadd.f32 %v1403, %v1404
    %v1406 = vsel %vm1103, %v1322, 0.0
    %v1407 = vadd.f32 %v1405, %v1406
    %v1408 = vsel %vm1103, %v1323, 0.0
    %v1409 = vadd.f32 %v1407, %v1408
    %v1410 = vsel %vm1103, %v1324, 0.0
    %v1411 = vadd.f32 %v1409, %v1410
    %v1412 = vsel %vm1103, %v1325, 0.0
    %v1413 = vadd.f32 %v1411, %v1412
    %v1414 = vsel %vm1103, %v1326, 0.0
    %v1415 = vadd.f32 %v1413, %v1414
    %v1416 = vsel %vm1103, %v1327, 0.0
    %v1417 = vadd.f32 %v1415, %v1416
    %v1418 = vsel %vm1103, %v1328, 0.0
    %v1419 = vadd.f32 %v1417, %v1418
    %v1420 = vsel %vm1103, %v1329, 0.0
    %v1421 = vadd.f32 %v1419, %v1420
    %v1422 = vsel %vm1103, %v1330, 0.0
    %v1423 = vadd.f32 %v1421, %v1422
    %v1424 = vsel %vm1103, %v1331, 0.0
    %v1425 = vadd.f32 %v1423, %v1424
    %v1426 = vsel %vm1103, %v1332, 0.0
    %v1427 = vadd.f32 %v1425, %v1426
    %v1428 = vsel %vm1103, %v1333, 0.0
    %v1429 = vadd.f32 %v1427, %v1428
    %v1430 = vsel %vm1103, %v1334, 0.0
    %v1431 = vadd.f32 %v1429, %v1430
    %v1432 = vsel %vm1103, %v1335, 0.0
    %v1433 = vadd.f32 %v1431, %v1432
    %v1434 = vsel %vm1103, %v1336, 0.0
    %v1435 = vadd.f32 %v1433, %v1434
    %v1436 = vsel %vm1103, %v1337, 0.0
    %v1437 = vadd.f32 %v1435, %v1436
    %v1438 = vsel %vm1103, %v1338, 0.0
    %v1439 = vadd.f32 %v1437, %v1438
    %v1440 = vsel %vm1103, %v1339, 0.0
    %v1441 = vadd.f32 %v1439, %v1440
    %v1442 = vsel %vm1103, %v1340, 0.0
    %v1443 = vadd.f32 %v1441, %v1442
    %v1444 = vsel %vm1103, %v1341, 0.0
    %v1445 = vadd.f32 %v1443, %v1444
    %v1446 = vsel %vm1103, %v1342, 0.0
    %v1447 = vadd.f32 %v1445, %v1446
    %v1448 = vsel %vm1103, %v1343, 0.0
    %v1449 = vadd.f32 %v1447, %v1448
    %v1450 = vsel %vm1103, %v1344, 0.0
    %v1451 = vadd.f32 %v1449, %v1450
    %v1452 = vsel %vm1103, %v1345, 0.0
    %v1453 = vadd.f32 %v1451, %v1452
    %v1454 = vsel %vm1103, %v1346, 0.0
    %v1455 = vadd.f32 %v1453, %v1454
    %v1456 = vsel %vm1103, %v1347, 0.0
    %v1457 = vadd.f32 %v1455, %v1456
    %v1458 = vsel %vm1103, %v1348, 0.0
    %v1459 = vadd.f32 %v1457, %v1458
    %v1460 = vsel %vm1103, %v1349, 0.0
    %v1461 = vadd.f32 %v1459, %v1460
    %v1462 = vsel %vm1103, %v1350, 0.0
    %v1463 = vadd.f32 %v1461, %v1462
    %v1464 = vsel %vm1103, %v1351, 0.0
    %v1465 = vadd.f32 %v1463, %v1464
    %v1466 = vsel %vm1103, %v1352, 0.0
    %v1467 = vadd.f32 %v1465, %v1466
    %v1468 = vsel %vm1103, %v1353, 0.0
    %v1469 = vadd.f32 %v1467, %v1468
    %v1470 = vsel %vm1103, %v1354, 0.0
    %v1471 = vadd.f32 %v1469, %v1470
    %v1472 = vsel %vm1103, %v1355, 0.0
    %v1473 = vadd.f32 %v1471, %v1472
    %v1474 = vsel %vm1103, %v1356, 0.0
    %v1475 = vadd.f32 %v1473, %v1474
    %v1476 = vsel %vm1103, %v1357, 0.0
    %v1477 = vadd.f32 %v1475, %v1476
    %v1478 = vsel %vm1103, %v1358, 0.0
    %v1479 = vadd.f32 %v1477, %v1478
    %v1480 = vsel %vm1103, %v1359, 0.0
    %v1481 = vadd.f32 %v1479, %v1480
    %v1482 = vsel %vm1103, %v1360, 0.0
    %v1483 = vadd.f32 %v1481, %v1482
    %v1484 = vsel %vm1103, %v1361, 0.0
    %v1485 = vadd.f32 %v1483, %v1484
    %v1486 = vsel %vm1103, %v1362, 0.0
    %v1487 = vadd.f32 %v1485, %v1486
    %v1488 = vsel %vm1103, %v1363, 0.0
    %v1489 = vadd.f32 %v1487, %v1488
    %v1490 = vsel %vm1103, %v1364, 0.0
    %v1491 = vadd.f32 %v1489, %v1490
    %v1492 = vrot.slane %v1491, 4
    %v1493 = vadd.f32 %v1491, %v1492
    %v1494 = vrot.slane %v1493, 2
    %v1495 = vadd.f32 %v1493, %v1494
    %v1496 = vrot.slane %v1495, 1
    %v1497 = vadd.f32 %v1495, %v1496
    %v1498 = vsel %vm886, %v1300, %v1497
    %vm1499 = vcmask 254976
    %1500 = vst.msk [vmem:[#allocation4] sm:$0x3] %vm1499, %v1498
    // Predicated region
    $region14: #{tpu_custom_call.1} parent=1 // pred_check
      _
    $region15: #{tpu_custom_call.1} parent=1 // pred_check_branch
      %1502 = sbr.rel (0) target = $region17
    $region16: #{tpu_custom_call.1} parent=1 // pred_region
      _
    $region17: #{tpu_custom_call.1} parent=1 // pred_fallthru
      _
    // Predicated region
    $region18: #{tpu_custom_call.1} parent=1 // pred_check
      _
    $region19: #{tpu_custom_call.1} parent=1 // pred_check_branch
      %1504 = sbr.rel (0) target = $region21
    $region20: #{tpu_custom_call.1} parent=1 // pred_region
      _
    $region21: #{tpu_custom_call.1} parent=1 // pred_fallthru
      _
    // Predicated region
    $region22: #{tpu_custom_call.1} parent=1 // pred_check
      _
    $region23: #{tpu_custom_call.1} parent=1 // pred_check_branch
      %1506 = sbr.rel (0) target = $region25
    $region24: #{tpu_custom_call.1} parent=1 // pred_region
      %1508 = vsyncadd [#allocation3], 0
      %s1510 = sshll.u32 [#allocation2], 4
      %s1511 = int_to_ptr.vmem [resolvable:$true] %s1510
      %s1512 = sshll.u32 %s5, 4
      %s1513 = int_to_ptr.hbm [resolvable:$true] %s1512
      %1515 = dma.vmem_to_hbm [thread:$0]  %s1511, 32, %s1513, [#allocation3]
    $region25: #{tpu_custom_call.1} parent=1 // pred_fallthru
      _
    // Predicated region
    $region26: #{tpu_custom_call.1} parent=1 // pred_check
      _
    $region27: #{tpu_custom_call.1} parent=1 // pred_check_branch
      %1517 = sbr.rel (0) target = $region29
    $region28: #{tpu_custom_call.1} parent=1 // pred_region
      %1519 = vsyncadd [#allocation5], 0
      %s1521 = sshll.u32 [#allocation4], 4
      %s1522 = int_to_ptr.vmem [resolvable:$true] %s1521
      %s1523 = sshll.u32 %s6, 4
      %s1524 = int_to_ptr.hbm [resolvable:$true] %s1523
      %1526 = dma.vmem_to_hbm [thread:$0]  %s1522, 32, %s1524, [#allocation5]
    $region29: #{tpu_custom_call.1} parent=1 // pred_fallthru
      _
    // Predicated region
    $region30: #{tpu_custom_call.1} parent=1 // pred_check
      _
    $region31: #{tpu_custom_call.1} parent=1 // pred_check_branch
      %1528 = sbr.rel (0) target = $region33
    $region32: #{tpu_custom_call.1} parent=1 // pred_region
      _
    $region33: #{tpu_custom_call.1} parent=1 // pred_fallthru
      _
    // Predicated region
    $region34: #{tpu_custom_call.1} parent=1 // pred_check
      _
    $region35: #{tpu_custom_call.1} parent=1 // pred_check_branch
      %1530 = sbr.rel (0) target = $region37
    $region36: #{tpu_custom_call.1} parent=1 // pred_region
      _
    $region37: #{tpu_custom_call.1} parent=1 // pred_fallthru
      _
    // Predicated region
    $region38: #{tpu_custom_call.1} parent=1 // pred_check
      _
    $region39: #{tpu_custom_call.1} parent=1 // pred_check_branch
      %1532 = sbr.rel (0) target = $region41
    $region40: #{tpu_custom_call.1} parent=1 // pred_region
      %1534 = dma.done [#allocation3], 32
    $region41: #{tpu_custom_call.1} parent=1 // pred_fallthru
      _
    // Predicated region
    $region42: #{tpu_custom_call.1} parent=1 // pred_check
      _
    $region43: #{tpu_custom_call.1} parent=1 // pred_check_branch
      %1536 = sbr.rel (0) target = $region45
    $region44: #{tpu_custom_call.1} parent=1 // pred_region
      %1538 = dma.done [#allocation5], 32
    $region45: #{tpu_custom_call.1} parent=1 // pred_fallthru
      _
    %1539 = vsyncpa [#allocation3], 1
    %1540 = vsyncpa [#allocation5], 1

</llo_original>
